<compile_context>
chip_gen: v7x
topology: tpu7x:2x2x1
jax: 0.10.0
libtpu: 0.0.40
codegen_flags: <defaults>
</compile_context>

<pallas_src>
import functools

import jax
import jax.numpy as jnp
from jax.experimental import pallas as pl
from jax.experimental.pallas import tpu as pltpu


# ----------------------------- Pallas kernel --------------------------------
def _make_mha_kernel(heads: int, dim_head: int, scale: float):
    """Fully fused MHA kernel: qkv proj + per-head attention + out proj."""

    def kernel(x_ref, wq_ref, wk_ref, wv_ref, wo_ref, o_ref):
        x = x_ref[0]                                   # (T, dim)
        wq = wq_ref[...]                               # (dim, H*dh)
        wk = wk_ref[...]
        wv = wv_ref[...]
        wo = wo_ref[...]                               # (H*dh, dim)

        # Projections (single wide MXU matmuls, f32 accumulation).
        q = jnp.dot(x, wq, preferred_element_type=jnp.float32)
        k = jnp.dot(x, wk, preferred_element_type=jnp.float32)
        v = jnp.dot(x, wv, preferred_element_type=jnp.float32)

        outs = []
        for h in range(heads):                         # static unroll, H small
            lo, hi = h * dim_head, (h + 1) * dim_head
            qh = q[:, lo:hi]                           # (T, dh)
            kh = k[:, lo:hi]
            vh = v[:, lo:hi]

            # scores = qh @ kh^T * scale    (T, T)
            s = jax.lax.dot_general(
                qh, kh, (((1,), (1,)), ((), ())),
                preferred_element_type=jnp.float32) * scale

            # numerically-stable softmax along the key axis
            s = s - jnp.max(s, axis=-1, keepdims=True)
            p = jnp.exp(s)
            p = p / jnp.sum(p, axis=-1, keepdims=True)

            outs.append(jnp.dot(p, vh, preferred_element_type=jnp.float32))

        o_cat = jnp.concatenate(outs, axis=1)          # (T, H*dh), head-major
        y = jnp.dot(o_cat, wo, preferred_element_type=jnp.float32)
        o_ref[0] = y.astype(o_ref.dtype)

    return kernel


# ------------------------------- JAX wrapper ---------------------------------
def mha_forward(x, w_qkv, w_0, heads):
    """Pallas forward of MultiHeadAttention.

    x:      (B, T, dim)
    w_qkv:  (3*heads*dim_head, dim)   -- torch Linear(dim, 3*_dim, bias=False).weight
    w_0:    (dim, heads*dim_head)     -- torch Linear(_dim, dim, bias=False).weight
    """
    B, T, dim = x.shape
    dim_head = w_qkv.shape[0] // (3 * heads)
    hd = heads * dim_head
    scale = float(dim_head) ** -0.5

    # Re-order the fused QKV weight once (outside the kernel) to match the
    # einops split 'b t (d k h) -> k b h t d':  column index of (x @ w_qkv^T)
    # is  d*3*heads + k*heads + h.  Produce head-major (h outer, d inner)
    # per-matrix weights of shape (dim, heads*dim_head).
    w_all = w_qkv.T.reshape(dim, dim_head, 3, heads)          # (dim, d, k, h)
    w_all = jnp.transpose(w_all, (2, 0, 3, 1)).reshape(3, dim, hd)
    w_q, w_k, w_v = w_all[0], w_all[1], w_all[2]
    w_o = w_0.T                                               # (hd, dim)

    kernel = _make_mha_kernel(heads, dim_head, scale)
    full = lambda b: (0, 0)

    return pl.pallas_call(
        kernel,
        out_shape=jax.ShapeDtypeStruct((B, T, dim), x.dtype),
        grid=(B,),
        in_specs=[
            pl.BlockSpec((1, T, dim), lambda b: (b, 0, 0)),   # x tile (one batch)
            pl.BlockSpec((dim, hd), full),                    # W_q (resident)
            pl.BlockSpec((dim, hd), full),                    # W_k
            pl.BlockSpec((dim, hd), full),                    # W_v
            pl.BlockSpec((hd, dim), full),                    # W_o
        ],
        out_specs=pl.BlockSpec((1, T, dim), lambda b: (b, 0, 0)),
        compiler_params=pltpu.CompilerParams(
            dimension_semantics=("parallel",)),               # megacore on v7x
    )(x, w_q, w_k, w_v, w_o)


# --------------------------- pure-JAX reference -------------------------------
def reference_forward(x, w_qkv, w_0, heads):
    """Literal JAX translation of the PyTorch module (source of truth)."""
    B, T, dim = x.shape
    dim_head = w_qkv.shape[0] // (3 * heads)
    scale = float(dim_head) ** -0.5

    qkv = x @ w_qkv.T                                          # (B, T, 3*H*dh)
    qkv = qkv.reshape(B, T, dim_head, 3, heads)                # (B,T,d,k,h)
    qkv = jnp.transpose(qkv, (3, 0, 4, 1, 2))                  # (k,B,h,T,d)
    q, k, v = qkv[0], qkv[1], qkv[2]

    s = jnp.einsum('bhid,bhjd->bhij', q, k) * scale
    a = jax.nn.softmax(s, axis=-1)
    out = jnp.einsum('bhij,bhjd->bhid', a, v)                  # (B,H,T,d)
    out = jnp.transpose(out, (0, 2, 1, 3)).reshape(B, T, heads * dim_head)
    return out @ w_0.T


# --------------------------------- main ---------------------------------------
if __name__ == "__main__":
    key = jax.random.PRNGKey(0)
    kx, k1, k2 = jax.random.split(key, 3)

    B, T, dim, heads = 2, 8, 32, 8          # dim_head = 4, _dim = 32
    dim_head = dim // heads
    _dim = dim_head * heads

    x = jax.random.normal(kx, (B, T, dim), jnp.float32)
    w_qkv = 0.1 * jax.random.normal(k1, (_dim * 3, dim), jnp.float32)
    w_0 = 0.1 * jax.random.normal(k2, (dim, _dim), jnp.float32)

    fwd = jax.jit(functools.partial(mha_forward, heads=heads))
    out = jax.block_until_ready(fwd(x, w_qkv, w_0))

    ref = jax.block_until_ready(reference_forward(x, w_qkv, w_0, heads))

    assert out.shape == (B, T, dim)
    max_err = jnp.max(jnp.abs(out - ref))
    assert jnp.allclose(out, ref, rtol=1e-4, atol=1e-4), \
        f"max abs err = {max_err}"

    print("KERNEL_OK")
</pallas_src>

<mosaic_0001>
module attributes {stable_mosaic.version = 11 : i64} {
  func.func @kernel(%arg0: i32, %arg1: memref<1x8x32xf32, #tpu.memory_space<vmem>>, %arg2: memref<32x32xf32, #tpu.memory_space<vmem>>, %arg3: memref<32x32xf32, #tpu.memory_space<vmem>>, %arg4: memref<32x32xf32, #tpu.memory_space<vmem>>, %arg5: memref<32x32xf32, #tpu.memory_space<vmem>>, %arg6: memref<1x8x32xf32, #tpu.memory_space<vmem>>) attributes {dimension_semantics = [#tpu.dimension_semantics<parallel>], iteration_bounds = array<i64: 2>, scalar_prefetch = 0 : i64, scratch_operands = 0 : i64, tpu.core_type = #tpu.core_type<tc>, window_params = [{transform_indices = @transform_0, window_bounds = array<i64: 1, 8, 32>}, {pipeline_mode = #tpu.pipeline_mode<synchronous>, transform_indices = @transform_1, window_bounds = array<i64: 32, 32>}, {pipeline_mode = #tpu.pipeline_mode<synchronous>, transform_indices = @transform_2, window_bounds = array<i64: 32, 32>}, {pipeline_mode = #tpu.pipeline_mode<synchronous>, transform_indices = @transform_3, window_bounds = array<i64: 32, 32>}, {pipeline_mode = #tpu.pipeline_mode<synchronous>, transform_indices = @transform_4, window_bounds = array<i64: 32, 32>}, {transform_indices = @transform_5, window_bounds = array<i64: 1, 8, 32>}]} {
    %c0 = arith.constant 0 : index
    %c0_0 = arith.constant 0 : index
    %c0_1 = arith.constant 0 : index
    %0 = vector.load %arg1[%c0, %c0_0, %c0_1] : memref<1x8x32xf32, #tpu.memory_space<vmem>>, vector<1x8x32xf32>
    %1 = vector.shape_cast %0 : vector<1x8x32xf32> to vector<8x32xf32>
    %c0_2 = arith.constant 0 : index
    %c0_3 = arith.constant 0 : index
    %2 = vector.load %arg2[%c0_2, %c0_3] : memref<32x32xf32, #tpu.memory_space<vmem>>, vector<32x32xf32>
    %c0_4 = arith.constant 0 : index
    %c0_5 = arith.constant 0 : index
    %3 = vector.load %arg3[%c0_4, %c0_5] : memref<32x32xf32, #tpu.memory_space<vmem>>, vector<32x32xf32>
    %c0_6 = arith.constant 0 : index
    %c0_7 = arith.constant 0 : index
    %4 = vector.load %arg4[%c0_6, %c0_7] : memref<32x32xf32, #tpu.memory_space<vmem>>, vector<32x32xf32>
    %c0_8 = arith.constant 0 : index
    %c0_9 = arith.constant 0 : index
    %5 = vector.load %arg5[%c0_8, %c0_9] : memref<32x32xf32, #tpu.memory_space<vmem>>, vector<32x32xf32>
    %cst = arith.constant dense<0.000000e+00> : vector<8x32xf32>
    %6 = tpu.matmul %1, %2, %cst {dimension_numbers = #tpu.dot_dimension_numbers<[1], [0], [0], [1], [0, 0, 1, 1], [], []>} : vector<8x32xf32>, vector<32x32xf32>, vector<8x32xf32> -> vector<8x32xf32>
    %cst_10 = arith.constant dense<0.000000e+00> : vector<8x32xf32>
    %7 = tpu.matmul %1, %3, %cst_10 {dimension_numbers = #tpu.dot_dimension_numbers<[1], [0], [0], [1], [0, 0, 1, 1], [], []>} : vector<8x32xf32>, vector<32x32xf32>, vector<8x32xf32> -> vector<8x32xf32>
    %cst_11 = arith.constant dense<0.000000e+00> : vector<8x32xf32>
    %8 = tpu.matmul %1, %4, %cst_11 {dimension_numbers = #tpu.dot_dimension_numbers<[1], [0], [0], [1], [0, 0, 1, 1], [], []>} : vector<8x32xf32>, vector<32x32xf32>, vector<8x32xf32> -> vector<8x32xf32>
    %9 = vector.extract_strided_slice %6 {offsets = [0, 0], sizes = [8, 4], strides = [1, 1]} : vector<8x32xf32> to vector<8x4xf32>
    %10 = vector.extract_strided_slice %7 {offsets = [0, 0], sizes = [8, 4], strides = [1, 1]} : vector<8x32xf32> to vector<8x4xf32>
    %11 = vector.extract_strided_slice %8 {offsets = [0, 0], sizes = [8, 4], strides = [1, 1]} : vector<8x32xf32> to vector<8x4xf32>
    %cst_12 = arith.constant dense<0.000000e+00> : vector<8x8xf32>
    %12 = tpu.matmul %9, %10, %cst_12 {dimension_numbers = #tpu.dot_dimension_numbers<[1], [1], [0], [0], [0, 0, 1, 0], [], []>} : vector<8x4xf32>, vector<8x4xf32>, vector<8x8xf32> -> vector<8x8xf32>
    %cst_13 = arith.constant 5.000000e-01 : f32
    %13 = vector.broadcast %cst_13 : f32 to vector<8x8xf32>
    %14 = arith.mulf %12, %13 : vector<8x8xf32>
    %cst_14 = arith.constant dense<0xFF800000> : vector<8xf32>
    %15 = vector.multi_reduction <maximumf>, %14, %cst_14 [1] : vector<8x8xf32> to vector<8xf32>
    %16 = vector.shape_cast %15 : vector<8xf32> to vector<8x1xf32>
    %17 = vector.broadcast %16 : vector<8x1xf32> to vector<8x8xf32>
    %18 = arith.subf %14, %17 : vector<8x8xf32>
    %19 = math.exp %18 : vector<8x8xf32>
    %cst_15 = arith.constant dense<0.000000e+00> : vector<8xf32>
    %20 = vector.multi_reduction <add>, %19, %cst_15 [1] : vector<8x8xf32> to vector<8xf32>
    %21 = vector.shape_cast %20 : vector<8xf32> to vector<8x1xf32>
    %22 = vector.broadcast %21 : vector<8x1xf32> to vector<8x8xf32>
    %23 = arith.divf %19, %22 : vector<8x8xf32>
    %cst_16 = arith.constant dense<0.000000e+00> : vector<8x4xf32>
    %24 = tpu.matmul %23, %11, %cst_16 {dimension_numbers = #tpu.dot_dimension_numbers<[1], [0], [0], [1], [0, 0, 1, 1], [], []>} : vector<8x8xf32>, vector<8x4xf32>, vector<8x4xf32> -> vector<8x4xf32>
    %25 = vector.extract_strided_slice %6 {offsets = [0, 4], sizes = [8, 4], strides = [1, 1]} : vector<8x32xf32> to vector<8x4xf32>
    %26 = vector.extract_strided_slice %7 {offsets = [0, 4], sizes = [8, 4], strides = [1, 1]} : vector<8x32xf32> to vector<8x4xf32>
    %27 = vector.extract_strided_slice %8 {offsets = [0, 4], sizes = [8, 4], strides = [1, 1]} : vector<8x32xf32> to vector<8x4xf32>
    %cst_17 = arith.constant dense<0.000000e+00> : vector<8x8xf32>
    %28 = tpu.matmul %25, %26, %cst_17 {dimension_numbers = #tpu.dot_dimension_numbers<[1], [1], [0], [0], [0, 0, 1, 0], [], []>} : vector<8x4xf32>, vector<8x4xf32>, vector<8x8xf32> -> vector<8x8xf32>
    %cst_18 = arith.constant 5.000000e-01 : f32
    %29 = vector.broadcast %cst_18 : f32 to vector<8x8xf32>
    %30 = arith.mulf %28, %29 : vector<8x8xf32>
    %cst_19 = arith.constant dense<0xFF800000> : vector<8xf32>
    %31 = vector.multi_reduction <maximumf>, %30, %cst_19 [1] : vector<8x8xf32> to vector<8xf32>
    %32 = vector.shape_cast %31 : vector<8xf32> to vector<8x1xf32>
    %33 = vector.broadcast %32 : vector<8x1xf32> to vector<8x8xf32>
    %34 = arith.subf %30, %33 : vector<8x8xf32>
    %35 = math.exp %34 : vector<8x8xf32>
    %cst_20 = arith.constant dense<0.000000e+00> : vector<8xf32>
    %36 = vector.multi_reduction <add>, %35, %cst_20 [1] : vector<8x8xf32> to vector<8xf32>
    %37 = vector.shape_cast %36 : vector<8xf32> to vector<8x1xf32>
    %38 = vector.broadcast %37 : vector<8x1xf32> to vector<8x8xf32>
    %39 = arith.divf %35, %38 : vector<8x8xf32>
    %cst_21 = arith.constant dense<0.000000e+00> : vector<8x4xf32>
    %40 = tpu.matmul %39, %27, %cst_21 {dimension_numbers = #tpu.dot_dimension_numbers<[1], [0], [0], [1], [0, 0, 1, 1], [], []>} : vector<8x8xf32>, vector<8x4xf32>, vector<8x4xf32> -> vector<8x4xf32>
    %41 = vector.extract_strided_slice %6 {offsets = [0, 8], sizes = [8, 4], strides = [1, 1]} : vector<8x32xf32> to vector<8x4xf32>
    %42 = vector.extract_strided_slice %7 {offsets = [0, 8], sizes = [8, 4], strides = [1, 1]} : vector<8x32xf32> to vector<8x4xf32>
    %43 = vector.extract_strided_slice %8 {offsets = [0, 8], sizes = [8, 4], strides = [1, 1]} : vector<8x32xf32> to vector<8x4xf32>
    %cst_22 = arith.constant dense<0.000000e+00> : vector<8x8xf32>
    %44 = tpu.matmul %41, %42, %cst_22 {dimension_numbers = #tpu.dot_dimension_numbers<[1], [1], [0], [0], [0, 0, 1, 0], [], []>} : vector<8x4xf32>, vector<8x4xf32>, vector<8x8xf32> -> vector<8x8xf32>
    %cst_23 = arith.constant 5.000000e-01 : f32
    %45 = vector.broadcast %cst_23 : f32 to vector<8x8xf32>
    %46 = arith.mulf %44, %45 : vector<8x8xf32>
    %cst_24 = arith.constant dense<0xFF800000> : vector<8xf32>
    %47 = vector.multi_reduction <maximumf>, %46, %cst_24 [1] : vector<8x8xf32> to vector<8xf32>
    %48 = vector.shape_cast %47 : vector<8xf32> to vector<8x1xf32>
    %49 = vector.broadcast %48 : vector<8x1xf32> to vector<8x8xf32>
    %50 = arith.subf %46, %49 : vector<8x8xf32>
    %51 = math.exp %50 : vector<8x8xf32>
    %cst_25 = arith.constant dense<0.000000e+00> : vector<8xf32>
    %52 = vector.multi_reduction <add>, %51, %cst_25 [1] : vector<8x8xf32> to vector<8xf32>
    %53 = vector.shape_cast %52 : vector<8xf32> to vector<8x1xf32>
    %54 = vector.broadcast %53 : vector<8x1xf32> to vector<8x8xf32>
    %55 = arith.divf %51, %54 : vector<8x8xf32>
    %cst_26 = arith.constant dense<0.000000e+00> : vector<8x4xf32>
    %56 = tpu.matmul %55, %43, %cst_26 {dimension_numbers = #tpu.dot_dimension_numbers<[1], [0], [0], [1], [0, 0, 1, 1], [], []>} : vector<8x8xf32>, vector<8x4xf32>, vector<8x4xf32> -> vector<8x4xf32>
    %57 = vector.extract_strided_slice %6 {offsets = [0, 12], sizes = [8, 4], strides = [1, 1]} : vector<8x32xf32> to vector<8x4xf32>
    %58 = vector.extract_strided_slice %7 {offsets = [0, 12], sizes = [8, 4], strides = [1, 1]} : vector<8x32xf32> to vector<8x4xf32>
    %59 = vector.extract_strided_slice %8 {offsets = [0, 12], sizes = [8, 4], strides = [1, 1]} : vector<8x32xf32> to vector<8x4xf32>
    %cst_27 = arith.constant dense<0.000000e+00> : vector<8x8xf32>
    %60 = tpu.matmul %57, %58, %cst_27 {dimension_numbers = #tpu.dot_dimension_numbers<[1], [1], [0], [0], [0, 0, 1, 0], [], []>} : vector<8x4xf32>, vector<8x4xf32>, vector<8x8xf32> -> vector<8x8xf32>
    %cst_28 = arith.constant 5.000000e-01 : f32
    %61 = vector.broadcast %cst_28 : f32 to vector<8x8xf32>
    %62 = arith.mulf %60, %61 : vector<8x8xf32>
    %cst_29 = arith.constant dense<0xFF800000> : vector<8xf32>
    %63 = vector.multi_reduction <maximumf>, %62, %cst_29 [1] : vector<8x8xf32> to vector<8xf32>
    %64 = vector.shape_cast %63 : vector<8xf32> to vector<8x1xf32>
    %65 = vector.broadcast %64 : vector<8x1xf32> to vector<8x8xf32>
    %66 = arith.subf %62, %65 : vector<8x8xf32>
    %67 = math.exp %66 : vector<8x8xf32>
    %cst_30 = arith.constant dense<0.000000e+00> : vector<8xf32>
    %68 = vector.multi_reduction <add>, %67, %cst_30 [1] : vector<8x8xf32> to vector<8xf32>
    %69 = vector.shape_cast %68 : vector<8xf32> to vector<8x1xf32>
    %70 = vector.broadcast %69 : vector<8x1xf32> to vector<8x8xf32>
    %71 = arith.divf %67, %70 : vector<8x8xf32>
    %cst_31 = arith.constant dense<0.000000e+00> : vector<8x4xf32>
    %72 = tpu.matmul %71, %59, %cst_31 {dimension_numbers = #tpu.dot_dimension_numbers<[1], [0], [0], [1], [0, 0, 1, 1], [], []>} : vector<8x8xf32>, vector<8x4xf32>, vector<8x4xf32> -> vector<8x4xf32>
    %73 = vector.extract_strided_slice %6 {offsets = [0, 16], sizes = [8, 4], strides = [1, 1]} : vector<8x32xf32> to vector<8x4xf32>
    %74 = vector.extract_strided_slice %7 {offsets = [0, 16], sizes = [8, 4], strides = [1, 1]} : vector<8x32xf32> to vector<8x4xf32>
    %75 = vector.extract_strided_slice %8 {offsets = [0, 16], sizes = [8, 4], strides = [1, 1]} : vector<8x32xf32> to vector<8x4xf32>
    %cst_32 = arith.constant dense<0.000000e+00> : vector<8x8xf32>
    %76 = tpu.matmul %73, %74, %cst_32 {dimension_numbers = #tpu.dot_dimension_numbers<[1], [1], [0], [0], [0, 0, 1, 0], [], []>} : vector<8x4xf32>, vector<8x4xf32>, vector<8x8xf32> -> vector<8x8xf32>
    %cst_33 = arith.constant 5.000000e-01 : f32
    %77 = vector.broadcast %cst_33 : f32 to vector<8x8xf32>
    %78 = arith.mulf %76, %77 : vector<8x8xf32>
    %cst_34 = arith.constant dense<0xFF800000> : vector<8xf32>
    %79 = vector.multi_reduction <maximumf>, %78, %cst_34 [1] : vector<8x8xf32> to vector<8xf32>
    %80 = vector.shape_cast %79 : vector<8xf32> to vector<8x1xf32>
    %81 = vector.broadcast %80 : vector<8x1xf32> to vector<8x8xf32>
    %82 = arith.subf %78, %81 : vector<8x8xf32>
    %83 = math.exp %82 : vector<8x8xf32>
    %cst_35 = arith.constant dense<0.000000e+00> : vector<8xf32>
    %84 = vector.multi_reduction <add>, %83, %cst_35 [1] : vector<8x8xf32> to vector<8xf32>
    %85 = vector.shape_cast %84 : vector<8xf32> to vector<8x1xf32>
    %86 = vector.broadcast %85 : vector<8x1xf32> to vector<8x8xf32>
    %87 = arith.divf %83, %86 : vector<8x8xf32>
    %cst_36 = arith.constant dense<0.000000e+00> : vector<8x4xf32>
    %88 = tpu.matmul %87, %75, %cst_36 {dimension_numbers = #tpu.dot_dimension_numbers<[1], [0], [0], [1], [0, 0, 1, 1], [], []>} : vector<8x8xf32>, vector<8x4xf32>, vector<8x4xf32> -> vector<8x4xf32>
    %89 = vector.extract_strided_slice %6 {offsets = [0, 20], sizes = [8, 4], strides = [1, 1]} : vector<8x32xf32> to vector<8x4xf32>
    %90 = vector.extract_strided_slice %7 {offsets = [0, 20], sizes = [8, 4], strides = [1, 1]} : vector<8x32xf32> to vector<8x4xf32>
    %91 = vector.extract_strided_slice %8 {offsets = [0, 20], sizes = [8, 4], strides = [1, 1]} : vector<8x32xf32> to vector<8x4xf32>
    %cst_37 = arith.constant dense<0.000000e+00> : vector<8x8xf32>
    %92 = tpu.matmul %89, %90, %cst_37 {dimension_numbers = #tpu.dot_dimension_numbers<[1], [1], [0], [0], [0, 0, 1, 0], [], []>} : vector<8x4xf32>, vector<8x4xf32>, vector<8x8xf32> -> vector<8x8xf32>
    %cst_38 = arith.constant 5.000000e-01 : f32
    %93 = vector.broadcast %cst_38 : f32 to vector<8x8xf32>
    %94 = arith.mulf %92, %93 : vector<8x8xf32>
    %cst_39 = arith.constant dense<0xFF800000> : vector<8xf32>
    %95 = vector.multi_reduction <maximumf>, %94, %cst_39 [1] : vector<8x8xf32> to vector<8xf32>
    %96 = vector.shape_cast %95 : vector<8xf32> to vector<8x1xf32>
    %97 = vector.broadcast %96 : vector<8x1xf32> to vector<8x8xf32>
    %98 = arith.subf %94, %97 : vector<8x8xf32>
    %99 = math.exp %98 : vector<8x8xf32>
    %cst_40 = arith.constant dense<0.000000e+00> : vector<8xf32>
    %100 = vector.multi_reduction <add>, %99, %cst_40 [1] : vector<8x8xf32> to vector<8xf32>
    %101 = vector.shape_cast %100 : vector<8xf32> to vector<8x1xf32>
    %102 = vector.broadcast %101 : vector<8x1xf32> to vector<8x8xf32>
    %103 = arith.divf %99, %102 : vector<8x8xf32>
    %cst_41 = arith.constant dense<0.000000e+00> : vector<8x4xf32>
    %104 = tpu.matmul %103, %91, %cst_41 {dimension_numbers = #tpu.dot_dimension_numbers<[1], [0], [0], [1], [0, 0, 1, 1], [], []>} : vector<8x8xf32>, vector<8x4xf32>, vector<8x4xf32> -> vector<8x4xf32>
    %105 = vector.extract_strided_slice %6 {offsets = [0, 24], sizes = [8, 4], strides = [1, 1]} : vector<8x32xf32> to vector<8x4xf32>
    %106 = vector.extract_strided_slice %7 {offsets = [0, 24], sizes = [8, 4], strides = [1, 1]} : vector<8x32xf32> to vector<8x4xf32>
    %107 = vector.extract_strided_slice %8 {offsets = [0, 24], sizes = [8, 4], strides = [1, 1]} : vector<8x32xf32> to vector<8x4xf32>
    %cst_42 = arith.constant dense<0.000000e+00> : vector<8x8xf32>
    %108 = tpu.matmul %105, %106, %cst_42 {dimension_numbers = #tpu.dot_dimension_numbers<[1], [1], [0], [0], [0, 0, 1, 0], [], []>} : vector<8x4xf32>, vector<8x4xf32>, vector<8x8xf32> -> vector<8x8xf32>
    %cst_43 = arith.constant 5.000000e-01 : f32
    %109 = vector.broadcast %cst_43 : f32 to vector<8x8xf32>
    %110 = arith.mulf %108, %109 : vector<8x8xf32>
    %cst_44 = arith.constant dense<0xFF800000> : vector<8xf32>
    %111 = vector.multi_reduction <maximumf>, %110, %cst_44 [1] : vector<8x8xf32> to vector<8xf32>
    %112 = vector.shape_cast %111 : vector<8xf32> to vector<8x1xf32>
    %113 = vector.broadcast %112 : vector<8x1xf32> to vector<8x8xf32>
    %114 = arith.subf %110, %113 : vector<8x8xf32>
    %115 = math.exp %114 : vector<8x8xf32>
    %cst_45 = arith.constant dense<0.000000e+00> : vector<8xf32>
    %116 = vector.multi_reduction <add>, %115, %cst_45 [1] : vector<8x8xf32> to vector<8xf32>
    %117 = vector.shape_cast %116 : vector<8xf32> to vector<8x1xf32>
    %118 = vector.broadcast %117 : vector<8x1xf32> to vector<8x8xf32>
    %119 = arith.divf %115, %118 : vector<8x8xf32>
    %cst_46 = arith.constant dense<0.000000e+00> : vector<8x4xf32>
    %120 = tpu.matmul %119, %107, %cst_46 {dimension_numbers = #tpu.dot_dimension_numbers<[1], [0], [0], [1], [0, 0, 1, 1], [], []>} : vector<8x8xf32>, vector<8x4xf32>, vector<8x4xf32> -> vector<8x4xf32>
    %121 = vector.extract_strided_slice %6 {offsets = [0, 28], sizes = [8, 4], strides = [1, 1]} : vector<8x32xf32> to vector<8x4xf32>
    %122 = vector.extract_strided_slice %7 {offsets = [0, 28], sizes = [8, 4], strides = [1, 1]} : vector<8x32xf32> to vector<8x4xf32>
    %123 = vector.extract_strided_slice %8 {offsets = [0, 28], sizes = [8, 4], strides = [1, 1]} : vector<8x32xf32> to vector<8x4xf32>
    %cst_47 = arith.constant dense<0.000000e+00> : vector<8x8xf32>
    %124 = tpu.matmul %121, %122, %cst_47 {dimension_numbers = #tpu.dot_dimension_numbers<[1], [1], [0], [0], [0, 0, 1, 0], [], []>} : vector<8x4xf32>, vector<8x4xf32>, vector<8x8xf32> -> vector<8x8xf32>
    %cst_48 = arith.constant 5.000000e-01 : f32
    %125 = vector.broadcast %cst_48 : f32 to vector<8x8xf32>
    %126 = arith.mulf %124, %125 : vector<8x8xf32>
    %cst_49 = arith.constant dense<0xFF800000> : vector<8xf32>
    %127 = vector.multi_reduction <maximumf>, %126, %cst_49 [1] : vector<8x8xf32> to vector<8xf32>
    %128 = vector.shape_cast %127 : vector<8xf32> to vector<8x1xf32>
    %129 = vector.broadcast %128 : vector<8x1xf32> to vector<8x8xf32>
    %130 = arith.subf %126, %129 : vector<8x8xf32>
    %131 = math.exp %130 : vector<8x8xf32>
    %cst_50 = arith.constant dense<0.000000e+00> : vector<8xf32>
    %132 = vector.multi_reduction <add>, %131, %cst_50 [1] : vector<8x8xf32> to vector<8xf32>
    %133 = vector.shape_cast %132 : vector<8xf32> to vector<8x1xf32>
    %134 = vector.broadcast %133 : vector<8x1xf32> to vector<8x8xf32>
    %135 = arith.divf %131, %134 : vector<8x8xf32>
    %cst_51 = arith.constant dense<0.000000e+00> : vector<8x4xf32>
    %136 = tpu.matmul %135, %123, %cst_51 {dimension_numbers = #tpu.dot_dimension_numbers<[1], [0], [0], [1], [0, 0, 1, 1], [], []>} : vector<8x8xf32>, vector<8x4xf32>, vector<8x4xf32> -> vector<8x4xf32>
    %137 = tpu.concatenate %24, %40, %56, %72, %88, %104, %120, %136 in 1 : vector<8x4xf32>, vector<8x4xf32>, vector<8x4xf32>, vector<8x4xf32>, vector<8x4xf32>, vector<8x4xf32>, vector<8x4xf32>, vector<8x4xf32> -> vector<8x32xf32>
    %cst_52 = arith.constant dense<0.000000e+00> : vector<8x32xf32>
    %138 = tpu.matmul %137, %5, %cst_52 {dimension_numbers = #tpu.dot_dimension_numbers<[1], [0], [0], [1], [0, 0, 1, 1], [], []>} : vector<8x32xf32>, vector<32x32xf32>, vector<8x32xf32> -> vector<8x32xf32>
    %c0_53 = arith.constant 0 : index
    %c0_54 = arith.constant 0 : index
    %c0_55 = arith.constant 0 : index
    %139 = vector.load %arg6[%c0_53, %c0_54, %c0_55] : memref<1x8x32xf32, #tpu.memory_space<vmem>>, vector<1x8x32xf32>
    %140 = vector.shape_cast %139 : vector<1x8x32xf32> to vector<8x32xf32>
    %141 = vector.shape_cast %138 : vector<8x32xf32> to vector<1x8x32xf32>
    tpu.vector_store %arg6[%c0_53, %c0_54, %c0_55], %141 {strides = array<i32>} : memref<1x8x32xf32, #tpu.memory_space<vmem>>, vector<1x8x32xf32>,
    return
  }
  func.func @transform_0(%arg0: i32) -> (i32, i32, i32) {
    %c0_i32 = arith.constant 0 : i32
    %c0_i32_0 = arith.constant 0 : i32
    %c0_i32_1 = arith.constant 0 : i32
    return %arg0, %c0_i32, %c0_i32_0 : i32, i32, i32
  }
  func.func @transform_1(%arg0: i32) -> (i32, i32) {
    %c0_i32 = arith.constant 0 : i32
    %c0_i32_0 = arith.constant 0 : i32
    %c0_i32_1 = arith.constant 0 : i32
    return %c0_i32, %c0_i32_0 : i32, i32
  }
  func.func @transform_2(%arg0: i32) -> (i32, i32) {
    %c0_i32 = arith.constant 0 : i32
    %c0_i32_0 = arith.constant 0 : i32
    %c0_i32_1 = arith.constant 0 : i32
    return %c0_i32, %c0_i32_0 : i32, i32
  }
  func.func @transform_3(%arg0: i32) -> (i32, i32) {
    %c0_i32 = arith.constant 0 : i32
    %c0_i32_0 = arith.constant 0 : i32
    %c0_i32_1 = arith.constant 0 : i32
    return %c0_i32, %c0_i32_0 : i32, i32
  }
  func.func @transform_4(%arg0: i32) -> (i32, i32) {
    %c0_i32 = arith.constant 0 : i32
    %c0_i32_0 = arith.constant 0 : i32
    %c0_i32_1 = arith.constant 0 : i32
    return %c0_i32, %c0_i32_0 : i32, i32
  }
  func.func @transform_5(%arg0: i32) -> (i32, i32, i32) {
    %c0_i32 = arith.constant 0 : i32
    %c0_i32_0 = arith.constant 0 : i32
    %c0_i32_1 = arith.constant 0 : i32
    return %arg0, %c0_i32, %c0_i32_0 : i32, i32, i32
  }
}

</mosaic_0001>

<llo_original>
// kernel: mha_forward.1
$region0: #{mha_forward.1}
  #allocation0 [shape = 'u32[]', space=smem, size = 0x4, offset = 0x4, fixed_abs, tag = 'smem constant byte address 0x4 - core index']
  #allocation1 [shape = 'u32[144,128]{1,0:T(1,128)}', space=vmem, size = 0x12000, scoped, tag = 'internal scratch']
  %s0 = inlined_call_operand.vmem [shape: f32[2,8,32], index: 0, kind: input, shape index: {}]
  %s1 = inlined_call_operand.vmem [shape: f32[32,32], index: 1, kind: input, shape index: {}]
  %s2 = inlined_call_operand.vmem [shape: f32[32,32], index: 2, kind: input, shape index: {}]
  %s3 = inlined_call_operand.vmem [shape: f32[32,32], index: 3, kind: input, shape index: {}]
  %s4 = inlined_call_operand.vmem [shape: f32[32,32], index: 4, kind: input, shape index: {}]
  %s5 = inlined_call_operand.hbm [shape: f32[2,8,32], index: 5, kind: output, shape index: {}]
  %s6 = sld [smem:[#allocation0]]
  $region53: #{mha_forward.1} parent=0
    _
  %s8 = ssub.s32 1, %s6
  %s9 = scalar_select 0, %s8, %s6
  $region1: #{mha_forward.1} parent=0
    #allocation2 [shape = 'u8[8192]{0}', space=vmem, size = 0x2000, scoped, tag = 'output window, operand 0']
    #allocation3 [shape = 's32[2]{0}', space=sflag, size = 0x8, scoped, tag = 'scoped memory for mha_forward.1']
    %10 = vsyncpa [#allocation3], 0
    %s11 = scalar_lea.sflag [#allocation3], 1
    %12 = vsyncpa %s11, 0
    loop: start=0, step=1, limit=4
    $region2: #{mha_forward.1} parent=1 // loop_pre_header
      _
    $region3: #{mha_forward.1} parent=1 // loop_header
      %s14 = sphi 0, %s18
      %p15 = scmp.ge.s32.totalorder %s14, 4
      %s24 = sphi 0, %s26
      %s27 = sphi 0, %s24
      %s28 = sphi 0, %s27
      %s44 = sphi 0, %s28
      %s48 = sphi 0, %s48
      %s50 = sphi 0, %s48
      %s51 = sphi 0, %s50
      %s65 = sphi 0, %s51
      %s69 = sphi 0, %s69
      %s71 = sphi 0, %s69
      %s72 = sphi 0, %s71
      %s86 = sphi 0, %s72
      %s90 = sphi 0, %s90
      %s92 = sphi 0, %s90
      %s93 = sphi 0, %s92
      %s107 = sphi 0, %s93
      %s111 = sphi 0, %s111
      %s113 = sphi 0, %s111
      %s114 = sphi 0, %s113
      %s128 = sphi 0, %s114
      %s134 = sphi 0, %s136
      %s137 = sphi 0, %s134
      %s138 = sphi 0, %s137
      %s154 = sphi 0, %s138
    $region4: #{mha_forward.1} parent=1 // loop_header_branch
      %17 = sbr.rel (%p15) target = $region8
    $region5: #{mha_forward.1} parent=1 // loop_body
      %s19 = ssub.s32 %s14, 1
      %s20 = ssub.s32 %s14, 2
      %s21 = sadd.s32 %s14, 1
      %s22 = ssub.s32 %s14, %s21
      %p23 = scmp.eq.s32.totalorder %s22, 0
      %s25 = sadd.s32 %s24, 1
      %s26 = scalar_select %p23, %s24, %s25
      %p29 = pneg %p23
      %p30 = scmp.eq.s32.totalorder %s14, 1
      %p31 = por %p29, %p30
      %p32 = scmp.ne.s32.totalorder %s24, %s27
      %p33 = scmp.eq.s32.totalorder %s14, 0
      %p34 = por %p32, %p33
      %p35 = scmp.ne.s32.totalorder %s24, %s27
      %p36 = scmp.eq.s32.totalorder %s19, 1
      %p37 = por %p35, %p36
      %p38 = scmp.ne.s32.totalorder %s27, %s28
      %p39 = scmp.eq.s32.totalorder %s19, 0
      %p40 = por %p38, %p39
      %p41 = scmp.ne.s32.totalorder %s27, %s28
      %p42 = scmp.eq.s32.totalorder %s20, 1
      %p43 = por %p41, %p42
      %p45 = scmp.ne.s32.totalorder %s28, %s44
      %p46 = scmp.eq.s32.totalorder %s20, 0
      %p47 = por %p45, %p46
      %s49 = sadd.s32 %s48, 1
      %p52 = scmp.eq.s32.totalorder %s14, 1
      %p53 = scmp.ne.s32.totalorder %s48, %s50
      %p54 = scmp.eq.s32.totalorder %s14, 0
      %p55 = por %p53, %p54
      %p56 = scmp.ne.s32.totalorder %s48, %s50
      %p57 = scmp.eq.s32.totalorder %s19, 1
      %p58 = por %p56, %p57
      %p59 = scmp.ne.s32.totalorder %s50, %s51
      %p60 = scmp.eq.s32.totalorder %s19, 0
      %p61 = por %p59, %p60
      %p62 = scmp.ne.s32.totalorder %s50, %s51
      %p63 = scmp.eq.s32.totalorder %s20, 1
      %p64 = por %p62, %p63
      %p66 = scmp.ne.s32.totalorder %s51, %s65
      %p67 = scmp.eq.s32.totalorder %s20, 0
      %p68 = por %p66, %p67
      %s70 = sadd.s32 %s69, 1
      %p73 = scmp.eq.s32.totalorder %s14, 1
      %p74 = scmp.ne.s32.totalorder %s69, %s71
      %p75 = scmp.eq.s32.totalorder %s14, 0
      %p76 = por %p74, %p75
      %p77 = scmp.ne.s32.totalorder %s69, %s71
      %p78 = scmp.eq.s32.totalorder %s19, 1
      %p79 = por %p77, %p78
      %p80 = scmp.ne.s32.totalorder %s71, %s72
      %p81 = scmp.eq.s32.totalorder %s19, 0
      %p82 = por %p80, %p81
      %p83 = scmp.ne.s32.totalorder %s71, %s72
      %p84 = scmp.eq.s32.totalorder %s20, 1
      %p85 = por %p83, %p84
      %p87 = scmp.ne.s32.totalorder %s72, %s86
      %p88 = scmp.eq.s32.totalorder %s20, 0
      %p89 = por %p87, %p88
      %s91 = sadd.s32 %s90, 1
      %p94 = scmp.eq.s32.totalorder %s14, 1
      %p95 = scmp.ne.s32.totalorder %s90, %s92
      %p96 = scmp.eq.s32.totalorder %s14, 0
      %p97 = por %p95, %p96
      %p98 = scmp.ne.s32.totalorder %s90, %s92
      %p99 = scmp.eq.s32.totalorder %s19, 1
      %p100 = por %p98, %p99
      %p101 = scmp.ne.s32.totalorder %s92, %s93
      %p102 = scmp.eq.s32.totalorder %s19, 0
      %p103 = por %p101, %p102
      %p104 = scmp.ne.s32.totalorder %s92, %s93
      %p105 = scmp.eq.s32.totalorder %s20, 1
      %p106 = por %p104, %p105
      %p108 = scmp.ne.s32.totalorder %s93, %s107
      %p109 = scmp.eq.s32.totalorder %s20, 0
      %p110 = por %p108, %p109
      %s112 = sadd.s32 %s111, 1
      %p115 = scmp.eq.s32.totalorder %s14, 1
      %p116 = scmp.ne.s32.totalorder %s111, %s113
      %p117 = scmp.eq.s32.totalorder %s14, 0
      %p118 = por %p116, %p117
      %p119 = scmp.ne.s32.totalorder %s111, %s113
      %p120 = scmp.eq.s32.totalorder %s19, 1
      %p121 = por %p119, %p120
      %p122 = scmp.ne.s32.totalorder %s113, %s114
      %p123 = scmp.eq.s32.totalorder %s19, 0
      %p124 = por %p122, %p123
      %p125 = scmp.ne.s32.totalorder %s113, %s114
      %p126 = scmp.eq.s32.totalorder %s20, 1
      %p127 = por %p125, %p126
      %p129 = scmp.ne.s32.totalorder %s114, %s128
      %p130 = scmp.eq.s32.totalorder %s20, 0
      %p131 = por %p129, %p130
      %s132 = ssub.s32 %s14, %s21
      %p133 = scmp.eq.s32.totalorder %s132, 0
      %s135 = sadd.s32 %s134, 1
      %s136 = scalar_select %p133, %s134, %s135
      %p139 = pneg %p133
      %p140 = scmp.eq.s32.totalorder %s14, 1
      %p141 = por %p139, %p140
      %p142 = scmp.ne.s32.totalorder %s134, %s137
      %p143 = scmp.eq.s32.totalorder %s14, 0
      %p144 = por %p142, %p143
      %p145 = scmp.ne.s32.totalorder %s134, %s137
      %p146 = scmp.eq.s32.totalorder %s19, 1
      %p147 = por %p145, %p146
      %p148 = scmp.ne.s32.totalorder %s137, %s138
      %p149 = scmp.eq.s32.totalorder %s19, 0
      %p150 = por %p148, %p149
      %p151 = scmp.ne.s32.totalorder %s137, %s138
      %p152 = scmp.eq.s32.totalorder %s20, 1
      %p153 = por %p151, %p152
      %p155 = scmp.ne.s32.totalorder %s138, %s154
      %p156 = scmp.eq.s32.totalorder %s20, 0
      %p157 = por %p155, %p156
      %p158 = scmp.le.s32.totalorder 1, %s14
      %p159 = scmp.lt.s32.totalorder %s14, 3
      %p160 = pnand %p158, %p159
      %p161 = pneg %p160
      // Predicated region
      $region9: #{mha_forward.1} parent=5 // pred_check
        _
      $region10: #{mha_forward.1} parent=5 // pred_check_branch
        %163 = sbr.rel (%p160) target = $region12
      $region11: #{mha_forward.1} parent=5 // pred_region
        %s164 = ssub.s32 %s14, 1
        // Predicated region
        $region13: #{mha_forward.1} parent=11 // pred_check
          %p165 = pneg %p61
        $region14: #{mha_forward.1} parent=11 // pred_check_branch
          %167 = sbr.rel (%p165) target = $region16
        $region15: #{mha_forward.1} parent=11 // pred_region
          _
        $region16: #{mha_forward.1} parent=11 // pred_fallthru
          _
        // Predicated region
        $region17: #{mha_forward.1} parent=11 // pred_check
          %p168 = pneg %p82
        $region18: #{mha_forward.1} parent=11 // pred_check_branch
          %170 = sbr.rel (%p168) target = $region20
        $region19: #{mha_forward.1} parent=11 // pred_region
          _
        $region20: #{mha_forward.1} parent=11 // pred_fallthru
          _
        // Predicated region
        $region21: #{mha_forward.1} parent=11 // pred_check
          %p171 = pneg %p103
        $region22: #{mha_forward.1} parent=11 // pred_check_branch
          %173 = sbr.rel (%p171) target = $region24
        $region23: #{mha_forward.1} parent=11 // pred_region
          _
        $region24: #{mha_forward.1} parent=11 // pred_fallthru
          _
        // Predicated region
        $region25: #{mha_forward.1} parent=11 // pred_check
          %p174 = pneg %p124
        $region26: #{mha_forward.1} parent=11 // pred_check_branch
          %176 = sbr.rel (%p174) target = $region28
        $region27: #{mha_forward.1} parent=11 // pred_region
          _
        $region28: #{mha_forward.1} parent=11 // pred_fallthru
          _
      $region12: #{mha_forward.1} parent=5 // pred_fallthru
        _
      %p177 = scmp.lt.s32.totalorder %s14, 2
      // Predicated region
      $region29: #{mha_forward.1} parent=5 // pred_check
        %p178 = pneg %p177
      $region30: #{mha_forward.1} parent=5 // pred_check_branch
        %180 = sbr.rel (%p178) target = $region32
      $region31: #{mha_forward.1} parent=5 // pred_region
        // Predicated region
        $region33: #{mha_forward.1} parent=31 // pred_check
          %p181 = pneg %p34
        $region34: #{mha_forward.1} parent=31 // pred_check_branch
          %183 = sbr.rel (%p181) target = $region36
        $region35: #{mha_forward.1} parent=31 // pred_region
          %p184 = scmp.lt.s32.totalorder %s14, 1
          %s185 = scalar_select %p184, %s14, 1
          %s186 = smul.addr %s185, 8
          %s187 = scalar_lea.vmem %s0, %s186
        $region36: #{mha_forward.1} parent=31 // pred_fallthru
          _
      $region32: #{mha_forward.1} parent=5 // pred_fallthru
        _
      %p188 = scmp.le.s32.totalorder 1, %s14
      %p189 = scmp.lt.s32.totalorder %s14, 3
      %p190 = pnand %p188, %p189
      %p191 = pneg %p190
      // Predicated region
      $region37: #{mha_forward.1} parent=5 // pred_check
        _
      $region38: #{mha_forward.1} parent=5 // pred_check_branch
        %193 = sbr.rel (%p190) target = $region40
      $region39: #{mha_forward.1} parent=5 // pred_region
        %s194 = ssub.s32 %s14, 1
        %p195 = scmp.lt.s32.totalorder %s19, 1
        %s196 = scalar_select %p195, %s19, 1
        %s197 = smul.addr %s196, 8
        %s198 = scalar_lea.vmem %s0, %s197
        %p199 = pneg %p40
        %p200 = pneg %p37
        %p201 = pneg %p61
        %p202 = pneg %p58
        %p203 = pneg %p82
        %p204 = pneg %p79
        %p205 = pneg %p103
        %p206 = pneg %p100
        %p207 = pneg %p124
        %p208 = pneg %p121
        %p209 = pneg %p150
        %p210 = pneg %p147
        %s211 = sand.u32 %s137, 1
        %s212 = scalar_lea.sflag [#allocation3], %s211
        %s213 = sand.u32 %s137, 1
        %s214 = smul.addr %s213, 8
        %s215 = scalar_lea.vmem [#allocation2], %s214
        %p216 = scmp.lt.s32.totalorder %s19, 1
        %s217 = scalar_select %p216, %s19, 1
        %s218 = smul.addr %s217, 8
        %s219 = scalar_lea.vmem %s0, %s218
        %v220 = vld [vmem:[%s219] sm:$0xff]
        %v221 = vld [vmem:[%s1] sm:$0xff]
        %v222 = vld [vmem:[%s1 + $0x8] sm:$0xff]
        %v223 = vld [vmem:[%s1 + $0x10] sm:$0xff]
        %v224 = vld [vmem:[%s1 + $0x18] sm:$0xff]
        %v225 = vld [vmem:[%s2] sm:$0xff]
        %v226 = vld [vmem:[%s2 + $0x8] sm:$0xff]
        %v227 = vld [vmem:[%s2 + $0x10] sm:$0xff]
        %v228 = vld [vmem:[%s2 + $0x18] sm:$0xff]
        %v229 = vld [vmem:[%s3] sm:$0xff]
        %v230 = vld [vmem:[%s3 + $0x8] sm:$0xff]
        %v231 = vld [vmem:[%s3 + $0x10] sm:$0xff]
        %v232 = vld [vmem:[%s3 + $0x18] sm:$0xff]
        %v233 = vld [vmem:[%s4] sm:$0xff]
        %v234 = vld [vmem:[%s4 + $0x8] sm:$0xff]
        %v235 = vld [vmem:[%s4 + $0x10] sm:$0xff]
        %v236 = vld [vmem:[%s4 + $0x18] sm:$0xff]
        %vm237 = vcmask 261120
        %v239 = vsel %vm237, %v220, 0
        %241 = vmatprep.subr.mxu0 0.0
        %242 = vmatpush1.msra.mxu0 %v221
        %243 = vmatprep.subr.mxu0 0.0
        %244 = vmatpush1.msra.mxu0 %v222
        %245 = vmatprep.subr.mxu0 0.0
        %246 = vmatpush1.msra.mxu0 %v223
        %247 = vmatprep.subr.mxu0 0.0
        %248 = vmatpush1.msra.mxu0 %v224
        %249 = vmatprep.subr.mxu0 0.0
        %250 = vmatpush1.msra.mxu0 0.0
        %251 = vmatprep.subr.mxu0 0.0
        %252 = vmatpush1.msra.mxu0 0.0
        %253 = vmatprep.subr.mxu0 0.0
        %254 = vmatpush1.msra.mxu0 0.0
        %255 = vmatprep.subr.mxu0 0.0
        %256 = vmatpush1.msra.mxu0 0.0
        %257 = vmatprep.subr.mxu0 0.0
        %258 = vmatpush1.msra.mxu0 0.0
        %259 = vmatprep.subr.mxu0 0.0
        %260 = vmatpush1.msra.mxu0 0.0
        %261 = vmatprep.subr.mxu0 0.0
        %262 = vmatpush1.msra.mxu0 0.0
        %263 = vmatprep.subr.mxu0 0.0
        %264 = vmatpush1.msra.mxu0 0.0
        %265 = vmatprep.subr.mxu0 0.0
        %266 = vmatpush1.msra.mxu0 0.0
        %267 = vmatprep.subr.mxu0 0.0
        %268 = vmatpush1.msra.mxu0 0.0
        %269 = vmatprep.subr.mxu0 0.0
        %270 = vmatpush1.msra.mxu0 0.0
        %271 = vmatprep.subr.mxu0 0.0
        %272 = vmatpush1.msra.mxu0 0.0
        %273 = vmatprep.subr.mxu0 0.0
        %274 = vmatpush1.msra.mxu0 0.0
        %275 = vmatprep.subr.mxu0 0.0
        %276 = vmatpush1.msra.mxu0 0.0
        %277 = vmatprep.subr.mxu0 0.0
        %278 = vmatpush1.msra.mxu0 0.0
        %279 = vmatprep.subr.mxu0 0.0
        %280 = vmatpush1.msra.mxu0 0.0
        %281 = vmatprep.subr.mxu0 0.0
        %282 = vmatpush1.msra.mxu0 0.0
        %283 = vmatprep.subr.mxu0 0.0
        %284 = vmatpush1.msra.mxu0 0.0
        %285 = vmatprep.subr.mxu0 0.0
        %286 = vmatpush1.msra.mxu0 0.0
        %287 = vmatprep.subr.mxu0 0.0
        %288 = vmatpush1.msra.mxu0 0.0
        %289 = vmatprep.subr.mxu0 0.0
        %290 = vmatpush1.msra.mxu0 0.0
        %291 = vmatprep.subr.mxu0 0.0
        %292 = vmatpush1.msra.mxu0 0.0
        %293 = vmatprep.subr.mxu0 0.0
        %294 = vmatpush1.msra.mxu0 0.0
        %295 = vmatprep.subr.mxu0 0.0
        %296 = vmatpush1.msra.mxu0 0.0
        %297 = vmatprep.subr.mxu0 0.0
        %298 = vmatpush1.msra.mxu0 0.0
        %299 = vmatprep.subr.mxu0 0.0
        %300 = vmatpush1.msra.mxu0 0.0
        %301 = vmatprep.subr.mxu0 0.0
        %302 = vmatpush1.msra.mxu0 0.0
        %303 = vmatprep.subr.mxu0 0.0
        %304 = vmatpush1.msra.mxu0 0.0
        %305 = vmatprep.mubr.f32.mxu0 0.0
        %306 = vmatmul.mubr.f32.gmra.mrb[0].mxu0 %v239
        %v307 = vpop.f32.mrb[0].mxu0
        %v308 = vadd.f32 0.0, %v307
        %v309 = vpop.f32.mrb[0].mxu0
        %310 = vdwg.mxu0
        %311 = vmatprep.subr.mxu0 0.0
        %312 = vmatpush1.msra.mxu0 %v225
        %313 = vmatprep.subr.mxu0 0.0
        %314 = vmatpush1.msra.mxu0 %v226
        %315 = vmatprep.subr.mxu0 0.0
        %316 = vmatpush1.msra.mxu0 %v227
        %317 = vmatprep.subr.mxu0 0.0
        %318 = vmatpush1.msra.mxu0 %v228
        %319 = vmatprep.subr.mxu0 0.0
        %320 = vmatpush1.msra.mxu0 0.0
        %321 = vmatprep.subr.mxu0 0.0
        %322 = vmatpush1.msra.mxu0 0.0
        %323 = vmatprep.subr.mxu0 0.0
        %324 = vmatpush1.msra.mxu0 0.0
        %325 = vmatprep.subr.mxu0 0.0
        %326 = vmatpush1.msra.mxu0 0.0
        %327 = vmatprep.subr.mxu0 0.0
        %328 = vmatpush1.msra.mxu0 0.0
        %329 = vmatprep.subr.mxu0 0.0
        %330 = vmatpush1.msra.mxu0 0.0
        %331 = vmatprep.subr.mxu0 0.0
        %332 = vmatpush1.msra.mxu0 0.0
        %333 = vmatprep.subr.mxu0 0.0
        %334 = vmatpush1.msra.mxu0 0.0
        %335 = vmatprep.subr.mxu0 0.0
        %336 = vmatpush1.msra.mxu0 0.0
        %337 = vmatprep.subr.mxu0 0.0
        %338 = vmatpush1.msra.mxu0 0.0
        %339 = vmatprep.subr.mxu0 0.0
        %340 = vmatpush1.msra.mxu0 0.0
        %341 = vmatprep.subr.mxu0 0.0
        %342 = vmatpush1.msra.mxu0 0.0
        %343 = vmatprep.subr.mxu0 0.0
        %344 = vmatpush1.msra.mxu0 0.0
        %345 = vmatprep.subr.mxu0 0.0
        %346 = vmatpush1.msra.mxu0 0.0
        %347 = vmatprep.subr.mxu0 0.0
        %348 = vmatpush1.msra.mxu0 0.0
        %349 = vmatprep.subr.mxu0 0.0
        %350 = vmatpush1.msra.mxu0 0.0
        %351 = vmatprep.subr.mxu0 0.0
        %352 = vmatpush1.msra.mxu0 0.0
        %353 = vmatprep.subr.mxu0 0.0
        %354 = vmatpush1.msra.mxu0 0.0
        %355 = vmatprep.subr.mxu0 0.0
        %356 = vmatpush1.msra.mxu0 0.0
        %357 = vmatprep.subr.mxu0 0.0
        %358 = vmatpush1.msra.mxu0 0.0
        %359 = vmatprep.subr.mxu0 0.0
        %360 = vmatpush1.msra.mxu0 0.0
        %361 = vmatprep.subr.mxu0 0.0
        %362 = vmatpush1.msra.mxu0 0.0
        %363 = vmatprep.subr.mxu0 0.0
        %364 = vmatpush1.msra.mxu0 0.0
        %365 = vmatprep.subr.mxu0 0.0
        %366 = vmatpush1.msra.mxu0 0.0
        %367 = vmatprep.subr.mxu0 0.0
        %368 = vmatpush1.msra.mxu0 0.0
        %369 = vmatprep.subr.mxu0 0.0
        %370 = vmatpush1.msra.mxu0 0.0
        %371 = vmatprep.subr.mxu0 0.0
        %372 = vmatpush1.msra.mxu0 0.0
        %373 = vmatprep.subr.mxu0 0.0
        %374 = vmatpush1.msra.mxu0 0.0
        %375 = vmatprep.mubr.f32.mxu0 0.0
        %376 = vmatmul.mubr.f32.gmra.mrb[0].mxu0 %v239
        %v377 = vpop.f32.mrb[0].mxu0
        %v378 = vadd.f32 0.0, %v377
        %v379 = vpop.f32.mrb[0].mxu0
        %380 = vdwg.mxu0
        %381 = vmatprep.subr.mxu0 0.0
        %382 = vmatpush1.msra.mxu0 %v229
        %383 = vmatprep.subr.mxu0 0.0
        %384 = vmatpush1.msra.mxu0 %v230
        %385 = vmatprep.subr.mxu0 0.0
        %386 = vmatpush1.msra.mxu0 %v231
        %387 = vmatprep.subr.mxu0 0.0
        %388 = vmatpush1.msra.mxu0 %v232
        %389 = vmatprep.subr.mxu0 0.0
        %390 = vmatpush1.msra.mxu0 0.0
        %391 = vmatprep.subr.mxu0 0.0
        %392 = vmatpush1.msra.mxu0 0.0
        %393 = vmatprep.subr.mxu0 0.0
        %394 = vmatpush1.msra.mxu0 0.0
        %395 = vmatprep.subr.mxu0 0.0
        %396 = vmatpush1.msra.mxu0 0.0
        %397 = vmatprep.subr.mxu0 0.0
        %398 = vmatpush1.msra.mxu0 0.0
        %399 = vmatprep.subr.mxu0 0.0
        %400 = vmatpush1.msra.mxu0 0.0
        %401 = vmatprep.subr.mxu0 0.0
        %402 = vmatpush1.msra.mxu0 0.0
        %403 = vmatprep.subr.mxu0 0.0
        %404 = vmatpush1.msra.mxu0 0.0
        %405 = vmatprep.subr.mxu0 0.0
        %406 = vmatpush1.msra.mxu0 0.0
        %407 = vmatprep.subr.mxu0 0.0
        %408 = vmatpush1.msra.mxu0 0.0
        %409 = vmatprep.subr.mxu0 0.0
        %410 = vmatpush1.msra.mxu0 0.0
        %411 = vmatprep.subr.mxu0 0.0
        %412 = vmatpush1.msra.mxu0 0.0
        %413 = vmatprep.subr.mxu0 0.0
        %414 = vmatpush1.msra.mxu0 0.0
        %415 = vmatprep.subr.mxu0 0.0
        %416 = vmatpush1.msra.mxu0 0.0
        %417 = vmatprep.subr.mxu0 0.0
        %418 = vmatpush1.msra.mxu0 0.0
        %419 = vmatprep.subr.mxu0 0.0
        %420 = vmatpush1.msra.mxu0 0.0
        %421 = vmatprep.subr.mxu0 0.0
        %422 = vmatpush1.msra.mxu0 0.0
        %423 = vmatprep.subr.mxu0 0.0
        %424 = vmatpush1.msra.mxu0 0.0
        %425 = vmatprep.subr.mxu0 0.0
        %426 = vmatpush1.msra.mxu0 0.0
        %427 = vmatprep.subr.mxu0 0.0
        %428 = vmatpush1.msra.mxu0 0.0
        %429 = vmatprep.subr.mxu0 0.0
        %430 = vmatpush1.msra.mxu0 0.0
        %431 = vmatprep.subr.mxu0 0.0
        %432 = vmatpush1.msra.mxu0 0.0
        %433 = vmatprep.subr.mxu0 0.0
        %434 = vmatpush1.msra.mxu0 0.0
        %435 = vmatprep.subr.mxu0 0.0
        %436 = vmatpush1.msra.mxu0 0.0
        %437 = vmatprep.subr.mxu0 0.0
        %438 = vmatpush1.msra.mxu0 0.0
        %439 = vmatprep.subr.mxu0 0.0
        %440 = vmatpush1.msra.mxu0 0.0
        %441 = vmatprep.subr.mxu0 0.0
        %442 = vmatpush1.msra.mxu0 0.0
        %443 = vmatprep.subr.mxu0 0.0
        %444 = vmatpush1.msra.mxu0 0.0
        %445 = vmatprep.mubr.f32.mxu0 0.0
        %446 = vmatmul.mubr.f32.gmra.mrb[0].mxu0 %v239
        %v447 = vpop.f32.mrb[0].mxu0
        %v448 = vadd.f32 0.0, %v447
        %v449 = vpop.f32.mrb[0].mxu0
        %450 = vdwg.mxu0
        %vm451 = vcmask 31744
        %v453 = vsel %vm451, %v308, 0
        %v456 = vsel %vm451, %v378, 0
        %458 = vmatprep.subr.mxu0 0.0
        %459 = vmatpush1.xpose.msra.mxu0 %v456
        %460 = vmatprep.subr.mxu0 0.0
        %461 = vmatpush1.xpose.msra.mxu0 0.0
        %462 = vmatprep.subr.mxu0 0.0
        %463 = vmatpush1.xpose.msra.mxu0 0.0
        %464 = vmatprep.subr.mxu0 0.0
        %465 = vmatpush1.xpose.msra.mxu0 0.0
        %466 = vmatprep.subr.mxu0 0.0
        %467 = vmatpush1.xpose.msra.mxu0 0.0
        %468 = vmatprep.subr.mxu0 0.0
        %469 = vmatpush1.xpose.msra.mxu0 0.0
        %470 = vmatprep.subr.mxu0 0.0
        %471 = vmatpush1.xpose.msra.mxu0 0.0
        %472 = vmatprep.subr.mxu0 0.0
        %473 = vmatpush1.xpose.msra.mxu0 0.0
        %474 = vmatprep.subr.mxu0 0.0
        %475 = vmatpush1.xpose.msra.mxu0 0.0
        %476 = vmatprep.subr.mxu0 0.0
        %477 = vmatpush1.xpose.msra.mxu0 0.0
        %478 = vmatprep.subr.mxu0 0.0
        %479 = vmatpush1.xpose.msra.mxu0 0.0
        %480 = vmatprep.subr.mxu0 0.0
        %481 = vmatpush1.xpose.msra.mxu0 0.0
        %482 = vmatprep.subr.mxu0 0.0
        %483 = vmatpush1.xpose.msra.mxu0 0.0
        %484 = vmatprep.subr.mxu0 0.0
        %485 = vmatpush1.xpose.msra.mxu0 0.0
        %486 = vmatprep.subr.mxu0 0.0
        %487 = vmatpush1.xpose.msra.mxu0 0.0
        %488 = vmatprep.subr.mxu0 0.0
        %489 = vmatpush1.xpose.msra.mxu0 0.0
        %490 = vmatprep.subr.mxu0 0.0
        %491 = vmatpush1.xpose.msra.mxu0 0.0
        %492 = vmatprep.subr.mxu0 0.0
        %493 = vmatpush1.xpose.msra.mxu0 0.0
        %494 = vmatprep.subr.mxu0 0.0
        %495 = vmatpush1.xpose.msra.mxu0 0.0
        %496 = vmatprep.subr.mxu0 0.0
        %497 = vmatpush1.xpose.msra.mxu0 0.0
        %498 = vmatprep.subr.mxu0 0.0
        %499 = vmatpush1.xpose.msra.mxu0 0.0
        %500 = vmatprep.subr.mxu0 0.0
        %501 = vmatpush1.xpose.msra.mxu0 0.0
        %502 = vmatprep.subr.mxu0 0.0
        %503 = vmatpush1.xpose.msra.mxu0 0.0
        %504 = vmatprep.subr.mxu0 0.0
        %505 = vmatpush1.xpose.msra.mxu0 0.0
        %506 = vmatprep.subr.mxu0 0.0
        %507 = vmatpush1.xpose.msra.mxu0 0.0
        %508 = vmatprep.subr.mxu0 0.0
        %509 = vmatpush1.xpose.msra.mxu0 0.0
        %510 = vmatprep.subr.mxu0 0.0
        %511 = vmatpush1.xpose.msra.mxu0 0.0
        %512 = vmatprep.subr.mxu0 0.0
        %513 = vmatpush1.xpose.msra.mxu0 0.0
        %514 = vmatprep.subr.mxu0 0.0
        %515 = vmatpush1.xpose.msra.mxu0 0.0
        %516 = vmatprep.subr.mxu0 0.0
        %517 = vmatpush1.xpose.msra.mxu0 0.0
        %518 = vmatprep.subr.mxu0 0.0
        %519 = vmatpush1.xpose.msra.mxu0 0.0
        %520 = vmatprep.subr.mxu0 0.0
        %521 = vmatpush1.xpose.msra.mxu0 0.0
        %522 = vmatprep.mubr.f32.mxu0 0.0
        %523 = vmatmul.mubr.f32.gmra.mrb[0].mxu0 %v453
        %v524 = vpop.f32.mrb[0].mxu0
        %v525 = vadd.f32 0.0, %v524
        %v526 = vpop.f32.mrb[0].mxu0
        %527 = vdwg.mxu0
        %v528 = vmul.f32 %v525, 0.5
        %vm529 = vcmask 64512
        %v530 = vsel %vm529, %v528, -inf
        %531 = vmax.xlane.f32.xlu0 %v530
        %v532 = vpop.xlane.xlu0 %531
        %v533 = vsub.f32 %v528, %v532
        %v534 = vmul.f32 %v533, 1.442695
        %v535 = vpow.pop %v534
        %v536 = vsel %vm529, %v535, 0.0
        %537 = vadd.xlane.f32.xlu0 %v536
        %v538 = vpop.xlane.xlu0 %537
        %v539 = vrcp.pop %v538
        %v540 = vmul.f32 %v535, %v539
        %v542 = vsel %vm529, %v540, 0
        %544 = vmatprep.subr.mxu0 0.0
        %545 = vmatpush1.msra.mxu0 %v448
        %546 = vmatprep.subr.mxu0 0.0
        %547 = vmatpush1.msra.mxu0 0.0
        %548 = vmatprep.subr.mxu0 0.0
        %549 = vmatpush1.msra.mxu0 0.0
        %550 = vmatprep.subr.mxu0 0.0
        %551 = vmatpush1.msra.mxu0 0.0
        %552 = vmatprep.subr.mxu0 0.0
        %553 = vmatpush1.msra.mxu0 0.0
        %554 = vmatprep.subr.mxu0 0.0
        %555 = vmatpush1.msra.mxu0 0.0
        %556 = vmatprep.subr.mxu0 0.0
        %557 = vmatpush1.msra.mxu0 0.0
        %558 = vmatprep.subr.mxu0 0.0
        %559 = vmatpush1.msra.mxu0 0.0
        %560 = vmatprep.subr.mxu0 0.0
        %561 = vmatpush1.msra.mxu0 0.0
        %562 = vmatprep.subr.mxu0 0.0
        %563 = vmatpush1.msra.mxu0 0.0
        %564 = vmatprep.subr.mxu0 0.0
        %565 = vmatpush1.msra.mxu0 0.0
        %566 = vmatprep.subr.mxu0 0.0
        %567 = vmatpush1.msra.mxu0 0.0
        %568 = vmatprep.subr.mxu0 0.0
        %569 = vmatpush1.msra.mxu0 0.0
        %570 = vmatprep.subr.mxu0 0.0
        %571 = vmatpush1.msra.mxu0 0.0
        %572 = vmatprep.subr.mxu0 0.0
        %573 = vmatpush1.msra.mxu0 0.0
        %574 = vmatprep.subr.mxu0 0.0
        %575 = vmatpush1.msra.mxu0 0.0
        %576 = vmatprep.subr.mxu0 0.0
        %577 = vmatpush1.msra.mxu0 0.0
        %578 = vmatprep.subr.mxu0 0.0
        %579 = vmatpush1.msra.mxu0 0.0
        %580 = vmatprep.subr.mxu0 0.0
        %581 = vmatpush1.msra.mxu0 0.0
        %582 = vmatprep.subr.mxu0 0.0
        %583 = vmatpush1.msra.mxu0 0.0
        %584 = vmatprep.subr.mxu0 0.0
        %585 = vmatpush1.msra.mxu0 0.0
        %586 = vmatprep.subr.mxu0 0.0
        %587 = vmatpush1.msra.mxu0 0.0
        %588 = vmatprep.subr.mxu0 0.0
        %589 = vmatpush1.msra.mxu0 0.0
        %590 = vmatprep.subr.mxu0 0.0
        %591 = vmatpush1.msra.mxu0 0.0
        %592 = vmatprep.subr.mxu0 0.0
        %593 = vmatpush1.msra.mxu0 0.0
        %594 = vmatprep.subr.mxu0 0.0
        %595 = vmatpush1.msra.mxu0 0.0
        %596 = vmatprep.subr.mxu0 0.0
        %597 = vmatpush1.msra.mxu0 0.0
        %598 = vmatprep.subr.mxu0 0.0
        %599 = vmatpush1.msra.mxu0 0.0
        %600 = vmatprep.subr.mxu0 0.0
        %601 = vmatpush1.msra.mxu0 0.0
        %602 = vmatprep.subr.mxu0 0.0
        %603 = vmatpush1.msra.mxu0 0.0
        %604 = vmatprep.subr.mxu0 0.0
        %605 = vmatpush1.msra.mxu0 0.0
        %606 = vmatprep.subr.mxu0 0.0
        %607 = vmatpush1.msra.mxu0 0.0
        %608 = vmatprep.mubr.f32.mxu0 0.0
        %609 = vmatmul.mubr.f32.gmra.mrb[0].mxu0 %v542
        %v610 = vpop.f32.mrb[0].mxu0
        %v611 = vadd.f32 0.0, %v610
        %v612 = vpop.f32.mrb[0].mxu0
        %613 = vdwg.mxu0
        %614 = vrot.lane.b32.xlu0 %v308, 124
        %v615 = vpop.permute.xlu0 %614
        %616 = vrot.lane.b32.xlu0 %v378, 124
        %v617 = vpop.permute.xlu0 %616
        %v618 = vsel %vm451, %v615, 0
        %v620 = vsel %vm451, %v617, 0
        %622 = vmatprep.subr.mxu0 0.0
        %623 = vmatpush1.xpose.msra.mxu0 %v620
        %624 = vmatprep.subr.mxu0 0.0
        %625 = vmatpush1.xpose.msra.mxu0 0.0
        %626 = vmatprep.subr.mxu0 0.0
        %627 = vmatpush1.xpose.msra.mxu0 0.0
        %628 = vmatprep.subr.mxu0 0.0
        %629 = vmatpush1.xpose.msra.mxu0 0.0
        %630 = vmatprep.subr.mxu0 0.0
        %631 = vmatpush1.xpose.msra.mxu0 0.0
        %632 = vmatprep.subr.mxu0 0.0
        %633 = vmatpush1.xpose.msra.mxu0 0.0
        %634 = vmatprep.subr.mxu0 0.0
        %635 = vmatpush1.xpose.msra.mxu0 0.0
        %636 = vmatprep.subr.mxu0 0.0
        %637 = vmatpush1.xpose.msra.mxu0 0.0
        %638 = vmatprep.subr.mxu0 0.0
        %639 = vmatpush1.xpose.msra.mxu0 0.0
        %640 = vmatprep.subr.mxu0 0.0
        %641 = vmatpush1.xpose.msra.mxu0 0.0
        %642 = vmatprep.subr.mxu0 0.0
        %643 = vmatpush1.xpose.msra.mxu0 0.0
        %644 = vmatprep.subr.mxu0 0.0
        %645 = vmatpush1.xpose.msra.mxu0 0.0
        %646 = vmatprep.subr.mxu0 0.0
        %647 = vmatpush1.xpose.msra.mxu0 0.0
        %648 = vmatprep.subr.mxu0 0.0
        %649 = vmatpush1.xpose.msra.mxu0 0.0
        %650 = vmatprep.subr.mxu0 0.0
        %651 = vmatpush1.xpose.msra.mxu0 0.0
        %652 = vmatprep.subr.mxu0 0.0
        %653 = vmatpush1.xpose.msra.mxu0 0.0
        %654 = vmatprep.subr.mxu0 0.0
        %655 = vmatpush1.xpose.msra.mxu0 0.0
        %656 = vmatprep.subr.mxu0 0.0
        %657 = vmatpush1.xpose.msra.mxu0 0.0
        %658 = vmatprep.subr.mxu0 0.0
        %659 = vmatpush1.xpose.msra.mxu0 0.0
        %660 = vmatprep.subr.mxu0 0.0
        %661 = vmatpush1.xpose.msra.mxu0 0.0
        %662 = vmatprep.subr.mxu0 0.0
        %663 = vmatpush1.xpose.msra.mxu0 0.0
        %664 = vmatprep.subr.mxu0 0.0
        %665 = vmatpush1.xpose.msra.mxu0 0.0
        %666 = vmatprep.subr.mxu0 0.0
        %667 = vmatpush1.xpose.msra.mxu0 0.0
        %668 = vmatprep.subr.mxu0 0.0
        %669 = vmatpush1.xpose.msra.mxu0 0.0
        %670 = vmatprep.subr.mxu0 0.0
        %671 = vmatpush1.xpose.msra.mxu0 0.0
        %672 = vmatprep.subr.mxu0 0.0
        %673 = vmatpush1.xpose.msra.mxu0 0.0
        %674 = vmatprep.subr.mxu0 0.0
        %675 = vmatpush1.xpose.msra.mxu0 0.0
        %676 = vmatprep.subr.mxu0 0.0
        %677 = vmatpush1.xpose.msra.mxu0 0.0
        %678 = vmatprep.subr.mxu0 0.0
        %679 = vmatpush1.xpose.msra.mxu0 0.0
        %680 = vmatprep.subr.mxu0 0.0
        %681 = vmatpush1.xpose.msra.mxu0 0.0
        %682 = vmatprep.subr.mxu0 0.0
        %683 = vmatpush1.xpose.msra.mxu0 0.0
        %684 = vmatprep.subr.mxu0 0.0
        %685 = vmatpush1.xpose.msra.mxu0 0.0
        %686 = vmatprep.mubr.f32.mxu0 0.0
        %687 = vmatmul.mubr.f32.gmra.mrb[0].mxu0 %v618
        %v688 = vpop.f32.mrb[0].mxu0
        %v689 = vadd.f32 0.0, %v688
        %v690 = vpop.f32.mrb[0].mxu0
        %691 = vdwg.mxu0
        %v692 = vmul.f32 %v689, 0.5
        %v693 = vsel %vm529, %v692, -inf
        %694 = vmax.xlane.f32.xlu0 %v693
        %v695 = vpop.xlane.xlu0 %694
        %v696 = vsub.f32 %v692, %v695
        %v697 = vmul.f32 %v696, 1.442695
        %v698 = vpow.pop %v697
        %v699 = vsel %vm529, %v698, 0.0
        %700 = vadd.xlane.f32.xlu0 %v699
        %v701 = vpop.xlane.xlu0 %700
        %v702 = vrcp.pop %v701
        %v703 = vmul.f32 %v698, %v702
        %705 = vrot.lane.b32.xlu0 %v448, 124
        %v706 = vpop.permute.xlu0 %705
        %v709 = vsel %vm529, %v703, 0
        %711 = vmatprep.subr.mxu0 0.0
        %712 = vmatpush1.msra.mxu0 %v706
        %713 = vmatprep.subr.mxu0 0.0
        %714 = vmatpush1.msra.mxu0 0.0
        %715 = vmatprep.subr.mxu0 0.0
        %716 = vmatpush1.msra.mxu0 0.0
        %717 = vmatprep.subr.mxu0 0.0
        %718 = vmatpush1.msra.mxu0 0.0
        %719 = vmatprep.subr.mxu0 0.0
        %720 = vmatpush1.msra.mxu0 0.0
        %721 = vmatprep.subr.mxu0 0.0
        %722 = vmatpush1.msra.mxu0 0.0
        %723 = vmatprep.subr.mxu0 0.0
        %724 = vmatpush1.msra.mxu0 0.0
        %725 = vmatprep.subr.mxu0 0.0
        %726 = vmatpush1.msra.mxu0 0.0
        %727 = vmatprep.subr.mxu0 0.0
        %728 = vmatpush1.msra.mxu0 0.0
        %729 = vmatprep.subr.mxu0 0.0
        %730 = vmatpush1.msra.mxu0 0.0
        %731 = vmatprep.subr.mxu0 0.0
        %732 = vmatpush1.msra.mxu0 0.0
        %733 = vmatprep.subr.mxu0 0.0
        %734 = vmatpush1.msra.mxu0 0.0
        %735 = vmatprep.subr.mxu0 0.0
        %736 = vmatpush1.msra.mxu0 0.0
        %737 = vmatprep.subr.mxu0 0.0
        %738 = vmatpush1.msra.mxu0 0.0
        %739 = vmatprep.subr.mxu0 0.0
        %740 = vmatpush1.msra.mxu0 0.0
        %741 = vmatprep.subr.mxu0 0.0
        %742 = vmatpush1.msra.mxu0 0.0
        %743 = vmatprep.subr.mxu0 0.0
        %744 = vmatpush1.msra.mxu0 0.0
        %745 = vmatprep.subr.mxu0 0.0
        %746 = vmatpush1.msra.mxu0 0.0
        %747 = vmatprep.subr.mxu0 0.0
        %748 = vmatpush1.msra.mxu0 0.0
        %749 = vmatprep.subr.mxu0 0.0
        %750 = vmatpush1.msra.mxu0 0.0
        %751 = vmatprep.subr.mxu0 0.0
        %752 = vmatpush1.msra.mxu0 0.0
        %753 = vmatprep.subr.mxu0 0.0
        %754 = vmatpush1.msra.mxu0 0.0
        %755 = vmatprep.subr.mxu0 0.0
        %756 = vmatpush1.msra.mxu0 0.0
        %757 = vmatprep.subr.mxu0 0.0
        %758 = vmatpush1.msra.mxu0 0.0
        %759 = vmatprep.subr.mxu0 0.0
        %760 = vmatpush1.msra.mxu0 0.0
        %761 = vmatprep.subr.mxu0 0.0
        %762 = vmatpush1.msra.mxu0 0.0
        %763 = vmatprep.subr.mxu0 0.0
        %764 = vmatpush1.msra.mxu0 0.0
        %765 = vmatprep.subr.mxu0 0.0
        %766 = vmatpush1.msra.mxu0 0.0
        %767 = vmatprep.subr.mxu0 0.0
        %768 = vmatpush1.msra.mxu0 0.0
        %769 = vmatprep.subr.mxu0 0.0
        %770 = vmatpush1.msra.mxu0 0.0
        %771 = vmatprep.subr.mxu0 0.0
        %772 = vmatpush1.msra.mxu0 0.0
        %773 = vmatprep.subr.mxu0 0.0
        %774 = vmatpush1.msra.mxu0 0.0
        %775 = vmatprep.mubr.f32.mxu0 0.0
        %776 = vmatmul.mubr.f32.gmra.mrb[0].mxu0 %v709
        %v777 = vpop.f32.mrb[0].mxu0
        %v778 = vadd.f32 0.0, %v777
        %v779 = vpop.f32.mrb[0].mxu0
        %780 = vdwg.mxu0
        %781 = vrot.lane.b32.xlu0 %v308, 120
        %v782 = vpop.permute.xlu0 %781
        %783 = vrot.lane.b32.xlu0 %v378, 120
        %v784 = vpop.permute.xlu0 %783
        %v785 = vsel %vm451, %v782, 0
        %v787 = vsel %vm451, %v784, 0
        %789 = vmatprep.subr.mxu0 0.0
        %790 = vmatpush1.xpose.msra.mxu0 %v787
        %791 = vmatprep.subr.mxu0 0.0
        %792 = vmatpush1.xpose.msra.mxu0 0.0
        %793 = vmatprep.subr.mxu0 0.0
        %794 = vmatpush1.xpose.msra.mxu0 0.0
        %795 = vmatprep.subr.mxu0 0.0
        %796 = vmatpush1.xpose.msra.mxu0 0.0
        %797 = vmatprep.subr.mxu0 0.0
        %798 = vmatpush1.xpose.msra.mxu0 0.0
        %799 = vmatprep.subr.mxu0 0.0
        %800 = vmatpush1.xpose.msra.mxu0 0.0
        %801 = vmatprep.subr.mxu0 0.0
        %802 = vmatpush1.xpose.msra.mxu0 0.0
        %803 = vmatprep.subr.mxu0 0.0
        %804 = vmatpush1.xpose.msra.mxu0 0.0
        %805 = vmatprep.subr.mxu0 0.0
        %806 = vmatpush1.xpose.msra.mxu0 0.0
        %807 = vmatprep.subr.mxu0 0.0
        %808 = vmatpush1.xpose.msra.mxu0 0.0
        %809 = vmatprep.subr.mxu0 0.0
        %810 = vmatpush1.xpose.msra.mxu0 0.0
        %811 = vmatprep.subr.mxu0 0.0
        %812 = vmatpush1.xpose.msra.mxu0 0.0
        %813 = vmatprep.subr.mxu0 0.0
        %814 = vmatpush1.xpose.msra.mxu0 0.0
        %815 = vmatprep.subr.mxu0 0.0
        %816 = vmatpush1.xpose.msra.mxu0 0.0
        %817 = vmatprep.subr.mxu0 0.0
        %818 = vmatpush1.xpose.msra.mxu0 0.0
        %819 = vmatprep.subr.mxu0 0.0
        %820 = vmatpush1.xpose.msra.mxu0 0.0
        %821 = vmatprep.subr.mxu0 0.0
        %822 = vmatpush1.xpose.msra.mxu0 0.0
        %823 = vmatprep.subr.mxu0 0.0
        %824 = vmatpush1.xpose.msra.mxu0 0.0
        %825 = vmatprep.subr.mxu0 0.0
        %826 = vmatpush1.xpose.msra.mxu0 0.0
        %827 = vmatprep.subr.mxu0 0.0
        %828 = vmatpush1.xpose.msra.mxu0 0.0
        %829 = vmatprep.subr.mxu0 0.0
        %830 = vmatpush1.xpose.msra.mxu0 0.0
        %831 = vmatprep.subr.mxu0 0.0
        %832 = vmatpush1.xpose.msra.mxu0 0.0
        %833 = vmatprep.subr.mxu0 0.0
        %834 = vmatpush1.xpose.msra.mxu0 0.0
        %835 = vmatprep.subr.mxu0 0.0
        %836 = vmatpush1.xpose.msra.mxu0 0.0
        %837 = vmatprep.subr.mxu0 0.0
        %838 = vmatpush1.xpose.msra.mxu0 0.0
        %839 = vmatprep.subr.mxu0 0.0
        %840 = vmatpush1.xpose.msra.mxu0 0.0
        %841 = vmatprep.subr.mxu0 0.0
        %842 = vmatpush1.xpose.msra.mxu0 0.0
        %843 = vmatprep.subr.mxu0 0.0
        %844 = vmatpush1.xpose.msra.mxu0 0.0
        %845 = vmatprep.subr.mxu0 0.0
        %846 = vmatpush1.xpose.msra.mxu0 0.0
        %847 = vmatprep.subr.mxu0 0.0
        %848 = vmatpush1.xpose.msra.mxu0 0.0
        %849 = vmatprep.subr.mxu0 0.0
        %850 = vmatpush1.xpose.msra.mxu0 0.0
        %851 = vmatprep.subr.mxu0 0.0
        %852 = vmatpush1.xpose.msra.mxu0 0.0
        %853 = vmatprep.mubr.f32.mxu0 0.0
        %854 = vmatmul.mubr.f32.gmra.mrb[0].mxu0 %v785
        %v855 = vpop.f32.mrb[0].mxu0
        %v856 = vadd.f32 0.0, %v855
        %v857 = vpop.f32.mrb[0].mxu0
        %858 = vdwg.mxu0
        %v859 = vmul.f32 %v856, 0.5
        %v860 = vsel %vm529, %v859, -inf
        %861 = vmax.xlane.f32.xlu0 %v860
        %v862 = vpop.xlane.xlu0 %861
        %v863 = vsub.f32 %v859, %v862
        %v864 = vmul.f32 %v863, 1.442695
        %v865 = vpow.pop %v864
        %v866 = vsel %vm529, %v865, 0.0
        %867 = vadd.xlane.f32.xlu0 %v866
        %v868 = vpop.xlane.xlu0 %867
        %v869 = vrcp.pop %v868
        %v870 = vmul.f32 %v865, %v869
        %871 = vrot.lane.b32.xlu0 %v448, 120
        %v872 = vpop.permute.xlu0 %871
        %v875 = vsel %vm529, %v870, 0
        %877 = vmatprep.subr.mxu0 0.0
        %878 = vmatpush1.msra.mxu0 %v872
        %879 = vmatprep.subr.mxu0 0.0
        %880 = vmatpush1.msra.mxu0 0.0
        %881 = vmatprep.subr.mxu0 0.0
        %882 = vmatpush1.msra.mxu0 0.0
        %883 = vmatprep.subr.mxu0 0.0
        %884 = vmatpush1.msra.mxu0 0.0
        %885 = vmatprep.subr.mxu0 0.0
        %886 = vmatpush1.msra.mxu0 0.0
        %887 = vmatprep.subr.mxu0 0.0
        %888 = vmatpush1.msra.mxu0 0.0
        %889 = vmatprep.subr.mxu0 0.0
        %890 = vmatpush1.msra.mxu0 0.0
        %891 = vmatprep.subr.mxu0 0.0
        %892 = vmatpush1.msra.mxu0 0.0
        %893 = vmatprep.subr.mxu0 0.0
        %894 = vmatpush1.msra.mxu0 0.0
        %895 = vmatprep.subr.mxu0 0.0
        %896 = vmatpush1.msra.mxu0 0.0
        %897 = vmatprep.subr.mxu0 0.0
        %898 = vmatpush1.msra.mxu0 0.0
        %899 = vmatprep.subr.mxu0 0.0
        %900 = vmatpush1.msra.mxu0 0.0
        %901 = vmatprep.subr.mxu0 0.0
        %902 = vmatpush1.msra.mxu0 0.0
        %903 = vmatprep.subr.mxu0 0.0
        %904 = vmatpush1.msra.mxu0 0.0
        %905 = vmatprep.subr.mxu0 0.0
        %906 = vmatpush1.msra.mxu0 0.0
        %907 = vmatprep.subr.mxu0 0.0
        %908 = vmatpush1.msra.mxu0 0.0
        %909 = vmatprep.subr.mxu0 0.0
        %910 = vmatpush1.msra.mxu0 0.0
        %911 = vmatprep.subr.mxu0 0.0
        %912 = vmatpush1.msra.mxu0 0.0
        %913 = vmatprep.subr.mxu0 0.0
        %914 = vmatpush1.msra.mxu0 0.0
        %915 = vmatprep.subr.mxu0 0.0
        %916 = vmatpush1.msra.mxu0 0.0
        %917 = vmatprep.subr.mxu0 0.0
        %918 = vmatpush1.msra.mxu0 0.0
        %919 = vmatprep.subr.mxu0 0.0
        %920 = vmatpush1.msra.mxu0 0.0
        %921 = vmatprep.subr.mxu0 0.0
        %922 = vmatpush1.msra.mxu0 0.0
        %923 = vmatprep.subr.mxu0 0.0
        %924 = vmatpush1.msra.mxu0 0.0
        %925 = vmatprep.subr.mxu0 0.0
        %926 = vmatpush1.msra.mxu0 0.0
        %927 = vmatprep.subr.mxu0 0.0
        %928 = vmatpush1.msra.mxu0 0.0
        %929 = vmatprep.subr.mxu0 0.0
        %930 = vmatpush1.msra.mxu0 0.0
        %931 = vmatprep.subr.mxu0 0.0
        %932 = vmatpush1.msra.mxu0 0.0
        %933 = vmatprep.subr.mxu0 0.0
        %934 = vmatpush1.msra.mxu0 0.0
        %935 = vmatprep.subr.mxu0 0.0
        %936 = vmatpush1.msra.mxu0 0.0
        %937 = vmatprep.subr.mxu0 0.0
        %938 = vmatpush1.msra.mxu0 0.0
        %939 = vmatprep.subr.mxu0 0.0
        %940 = vmatpush1.msra.mxu0 0.0
        %941 = vmatprep.mubr.f32.mxu0 0.0
        %942 = vmatmul.mubr.f32.gmra.mrb[0].mxu0 %v875
        %v943 = vpop.f32.mrb[0].mxu0
        %v944 = vadd.f32 0.0, %v943
        %v945 = vpop.f32.mrb[0].mxu0
        %946 = vdwg.mxu0
        %947 = vrot.lane.b32.xlu0 %v308, 116
        %v948 = vpop.permute.xlu0 %947
        %949 = vrot.lane.b32.xlu0 %v378, 116
        %v950 = vpop.permute.xlu0 %949
        %v951 = vsel %vm451, %v948, 0
        %v953 = vsel %vm451, %v950, 0
        %955 = vmatprep.subr.mxu0 0.0
        %956 = vmatpush1.xpose.msra.mxu0 %v953
        %957 = vmatprep.subr.mxu0 0.0
        %958 = vmatpush1.xpose.msra.mxu0 0.0
        %959 = vmatprep.subr.mxu0 0.0
        %960 = vmatpush1.xpose.msra.mxu0 0.0
        %961 = vmatprep.subr.mxu0 0.0
        %962 = vmatpush1.xpose.msra.mxu0 0.0
        %963 = vmatprep.subr.mxu0 0.0
        %964 = vmatpush1.xpose.msra.mxu0 0.0
        %965 = vmatprep.subr.mxu0 0.0
        %966 = vmatpush1.xpose.msra.mxu0 0.0
        %967 = vmatprep.subr.mxu0 0.0
        %968 = vmatpush1.xpose.msra.mxu0 0.0
        %969 = vmatprep.subr.mxu0 0.0
        %970 = vmatpush1.xpose.msra.mxu0 0.0
        %971 = vmatprep.subr.mxu0 0.0
        %972 = vmatpush1.xpose.msra.mxu0 0.0
        %973 = vmatprep.subr.mxu0 0.0
        %974 = vmatpush1.xpose.msra.mxu0 0.0
        %975 = vmatprep.subr.mxu0 0.0
        %976 = vmatpush1.xpose.msra.mxu0 0.0
        %977 = vmatprep.subr.mxu0 0.0
        %978 = vmatpush1.xpose.msra.mxu0 0.0
        %979 = vmatprep.subr.mxu0 0.0
        %980 = vmatpush1.xpose.msra.mxu0 0.0
        %981 = vmatprep.subr.mxu0 0.0
        %982 = vmatpush1.xpose.msra.mxu0 0.0
        %983 = vmatprep.subr.mxu0 0.0
        %984 = vmatpush1.xpose.msra.mxu0 0.0
        %985 = vmatprep.subr.mxu0 0.0
        %986 = vmatpush1.xpose.msra.mxu0 0.0
        %987 = vmatprep.subr.mxu0 0.0
        %988 = vmatpush1.xpose.msra.mxu0 0.0
        %989 = vmatprep.subr.mxu0 0.0
        %990 = vmatpush1.xpose.msra.mxu0 0.0
        %991 = vmatprep.subr.mxu0 0.0
        %992 = vmatpush1.xpose.msra.mxu0 0.0
        %993 = vmatprep.subr.mxu0 0.0
        %994 = vmatpush1.xpose.msra.mxu0 0.0
        %995 = vmatprep.subr.mxu0 0.0
        %996 = vmatpush1.xpose.msra.mxu0 0.0
        %997 = vmatprep.subr.mxu0 0.0
        %998 = vmatpush1.xpose.msra.mxu0 0.0
        %999 = vmatprep.subr.mxu0 0.0
        %1000 = vmatpush1.xpose.msra.mxu0 0.0
        %1001 = vmatprep.subr.mxu0 0.0
        %1002 = vmatpush1.xpose.msra.mxu0 0.0
        %1003 = vmatprep.subr.mxu0 0.0
        %1004 = vmatpush1.xpose.msra.mxu0 0.0
        %1005 = vmatprep.subr.mxu0 0.0
        %1006 = vmatpush1.xpose.msra.mxu0 0.0
        %1007 = vmatprep.subr.mxu0 0.0
        %1008 = vmatpush1.xpose.msra.mxu0 0.0
        %1009 = vmatprep.subr.mxu0 0.0
        %1010 = vmatpush1.xpose.msra.mxu0 0.0
        %1011 = vmatprep.subr.mxu0 0.0
        %1012 = vmatpush1.xpose.msra.mxu0 0.0
        %1013 = vmatprep.subr.mxu0 0.0
        %1014 = vmatpush1.xpose.msra.mxu0 0.0
        %1015 = vmatprep.subr.mxu0 0.0
        %1016 = vmatpush1.xpose.msra.mxu0 0.0
        %1017 = vmatprep.subr.mxu0 0.0
        %1018 = vmatpush1.xpose.msra.mxu0 0.0
        %1019 = vmatprep.mubr.f32.mxu0 0.0
        %1020 = vmatmul.mubr.f32.gmra.mrb[0].mxu0 %v951
        %v1021 = vpop.f32.mrb[0].mxu0
        %v1022 = vadd.f32 0.0, %v1021
        %v1023 = vpop.f32.mrb[0].mxu0
        %1024 = vdwg.mxu0
        %v1025 = vmul.f32 %v1022, 0.5
        %v1026 = vsel %vm529, %v1025, -inf
        %1027 = vmax.xlane.f32.xlu0 %v1026
        %v1028 = vpop.xlane.xlu0 %1027
        %v1029 = vsub.f32 %v1025, %v1028
        %v1030 = vmul.f32 %v1029, 1.442695
        %v1031 = vpow.pop %v1030
        %v1032 = vsel %vm529, %v1031, 0.0
        %1033 = vadd.xlane.f32.xlu0 %v1032
        %v1034 = vpop.xlane.xlu0 %1033
        %v1035 = vrcp.pop %v1034
        %v1036 = vmul.f32 %v1031, %v1035
        %1037 = vrot.lane.b32.xlu0 %v448, 116
        %v1038 = vpop.permute.xlu0 %1037
        %v1041 = vsel %vm529, %v1036, 0
        %1043 = vmatprep.subr.mxu0 0.0
        %1044 = vmatpush1.msra.mxu0 %v1038
        %1045 = vmatprep.subr.mxu0 0.0
        %1046 = vmatpush1.msra.mxu0 0.0
        %1047 = vmatprep.subr.mxu0 0.0
        %1048 = vmatpush1.msra.mxu0 0.0
        %1049 = vmatprep.subr.mxu0 0.0
        %1050 = vmatpush1.msra.mxu0 0.0
        %1051 = vmatprep.subr.mxu0 0.0
        %1052 = vmatpush1.msra.mxu0 0.0
        %1053 = vmatprep.subr.mxu0 0.0
        %1054 = vmatpush1.msra.mxu0 0.0
        %1055 = vmatprep.subr.mxu0 0.0
        %1056 = vmatpush1.msra.mxu0 0.0
        %1057 = vmatprep.subr.mxu0 0.0
        %1058 = vmatpush1.msra.mxu0 0.0
        %1059 = vmatprep.subr.mxu0 0.0
        %1060 = vmatpush1.msra.mxu0 0.0
        %1061 = vmatprep.subr.mxu0 0.0
        %1062 = vmatpush1.msra.mxu0 0.0
        %1063 = vmatprep.subr.mxu0 0.0
        %1064 = vmatpush1.msra.mxu0 0.0
        %1065 = vmatprep.subr.mxu0 0.0
        %1066 = vmatpush1.msra.mxu0 0.0
        %1067 = vmatprep.subr.mxu0 0.0
        %1068 = vmatpush1.msra.mxu0 0.0
        %1069 = vmatprep.subr.mxu0 0.0
        %1070 = vmatpush1.msra.mxu0 0.0
        %1071 = vmatprep.subr.mxu0 0.0
        %1072 = vmatpush1.msra.mxu0 0.0
        %1073 = vmatprep.subr.mxu0 0.0
        %1074 = vmatpush1.msra.mxu0 0.0
        %1075 = vmatprep.subr.mxu0 0.0
        %1076 = vmatpush1.msra.mxu0 0.0
        %1077 = vmatprep.subr.mxu0 0.0
        %1078 = vmatpush1.msra.mxu0 0.0
        %1079 = vmatprep.subr.mxu0 0.0
        %1080 = vmatpush1.msra.mxu0 0.0
        %1081 = vmatprep.subr.mxu0 0.0
        %1082 = vmatpush1.msra.mxu0 0.0
        %1083 = vmatprep.subr.mxu0 0.0
        %1084 = vmatpush1.msra.mxu0 0.0
        %1085 = vmatprep.subr.mxu0 0.0
        %1086 = vmatpush1.msra.mxu0 0.0
        %1087 = vmatprep.subr.mxu0 0.0
        %1088 = vmatpush1.msra.mxu0 0.0
        %1089 = vmatprep.subr.mxu0 0.0
        %1090 = vmatpush1.msra.mxu0 0.0
        %1091 = vmatprep.subr.mxu0 0.0
        %1092 = vmatpush1.msra.mxu0 0.0
        %1093 = vmatprep.subr.mxu0 0.0
        %1094 = vmatpush1.msra.mxu0 0.0
        %1095 = vmatprep.subr.mxu0 0.0
        %1096 = vmatpush1.msra.mxu0 0.0
        %1097 = vmatprep.subr.mxu0 0.0
        %1098 = vmatpush1.msra.mxu0 0.0
        %1099 = vmatprep.subr.mxu0 0.0
        %1100 = vmatpush1.msra.mxu0 0.0
        %1101 = vmatprep.subr.mxu0 0.0
        %1102 = vmatpush1.msra.mxu0 0.0
        %1103 = vmatprep.subr.mxu0 0.0
        %1104 = vmatpush1.msra.mxu0 0.0
        %1105 = vmatprep.subr.mxu0 0.0
        %1106 = vmatpush1.msra.mxu0 0.0
        %1107 = vmatprep.mubr.f32.mxu0 0.0
        %1108 = vmatmul.mubr.f32.gmra.mrb[0].mxu0 %v1041
        %v1109 = vpop.f32.mrb[0].mxu0
        %v1110 = vadd.f32 0.0, %v1109
        %v1111 = vpop.f32.mrb[0].mxu0
        %1112 = vdwg.mxu0
        %1113 = vrot.lane.b32.xlu0 %v308, 112
        %v1114 = vpop.permute.xlu0 %1113
        %1115 = vrot.lane.b32.xlu0 %v378, 112
        %v1116 = vpop.permute.xlu0 %1115
        %v1117 = vsel %vm451, %v1114, 0
        %v1119 = vsel %vm451, %v1116, 0
        %1121 = vmatprep.subr.mxu0 0.0
        %1122 = vmatpush1.xpose.msra.mxu0 %v1119
        %1123 = vmatprep.subr.mxu0 0.0
        %1124 = vmatpush1.xpose.msra.mxu0 0.0
        %1125 = vmatprep.subr.mxu0 0.0
        %1126 = vmatpush1.xpose.msra.mxu0 0.0
        %1127 = vmatprep.subr.mxu0 0.0
        %1128 = vmatpush1.xpose.msra.mxu0 0.0
        %1129 = vmatprep.subr.mxu0 0.0
        %1130 = vmatpush1.xpose.msra.mxu0 0.0
        %1131 = vmatprep.subr.mxu0 0.0
        %1132 = vmatpush1.xpose.msra.mxu0 0.0
        %1133 = vmatprep.subr.mxu0 0.0
        %1134 = vmatpush1.xpose.msra.mxu0 0.0
        %1135 = vmatprep.subr.mxu0 0.0
        %1136 = vmatpush1.xpose.msra.mxu0 0.0
        %1137 = vmatprep.subr.mxu0 0.0
        %1138 = vmatpush1.xpose.msra.mxu0 0.0
        %1139 = vmatprep.subr.mxu0 0.0
        %1140 = vmatpush1.xpose.msra.mxu0 0.0
        %1141 = vmatprep.subr.mxu0 0.0
        %1142 = vmatpush1.xpose.msra.mxu0 0.0
        %1143 = vmatprep.subr.mxu0 0.0
        %1144 = vmatpush1.xpose.msra.mxu0 0.0
        %1145 = vmatprep.subr.mxu0 0.0
        %1146 = vmatpush1.xpose.msra.mxu0 0.0
        %1147 = vmatprep.subr.mxu0 0.0
        %1148 = vmatpush1.xpose.msra.mxu0 0.0
        %1149 = vmatprep.subr.mxu0 0.0
        %1150 = vmatpush1.xpose.msra.mxu0 0.0
        %1151 = vmatprep.subr.mxu0 0.0
        %1152 = vmatpush1.xpose.msra.mxu0 0.0
        %1153 = vmatprep.subr.mxu0 0.0
        %1154 = vmatpush1.xpose.msra.mxu0 0.0
        %1155 = vmatprep.subr.mxu0 0.0
        %1156 = vmatpush1.xpose.msra.mxu0 0.0
        %1157 = vmatprep.subr.mxu0 0.0
        %1158 = vmatpush1.xpose.msra.mxu0 0.0
        %1159 = vmatprep.subr.mxu0 0.0
        %1160 = vmatpush1.xpose.msra.mxu0 0.0
        %1161 = vmatprep.subr.mxu0 0.0
        %1162 = vmatpush1.xpose.msra.mxu0 0.0
        %1163 = vmatprep.subr.mxu0 0.0
        %1164 = vmatpush1.xpose.msra.mxu0 0.0
        %1165 = vmatprep.subr.mxu0 0.0
        %1166 = vmatpush1.xpose.msra.mxu0 0.0
        %1167 = vmatprep.subr.mxu0 0.0
        %1168 = vmatpush1.xpose.msra.mxu0 0.0
        %1169 = vmatprep.subr.mxu0 0.0
        %1170 = vmatpush1.xpose.msra.mxu0 0.0
        %1171 = vmatprep.subr.mxu0 0.0
        %1172 = vmatpush1.xpose.msra.mxu0 0.0
        %1173 = vmatprep.subr.mxu0 0.0
        %1174 = vmatpush1.xpose.msra.mxu0 0.0
        %1175 = vmatprep.subr.mxu0 0.0
        %1176 = vmatpush1.xpose.msra.mxu0 0.0
        %1177 = vmatprep.subr.mxu0 0.0
        %1178 = vmatpush1.xpose.msra.mxu0 0.0
        %1179 = vmatprep.subr.mxu0 0.0
        %1180 = vmatpush1.xpose.msra.mxu0 0.0
        %1181 = vmatprep.subr.mxu0 0.0
        %1182 = vmatpush1.xpose.msra.mxu0 0.0
        %1183 = vmatprep.subr.mxu0 0.0
        %1184 = vmatpush1.xpose.msra.mxu0 0.0
        %1185 = vmatprep.mubr.f32.mxu0 0.0
        %1186 = vmatmul.mubr.f32.gmra.mrb[0].mxu0 %v1117
        %v1187 = vpop.f32.mrb[0].mxu0
        %v1188 = vadd.f32 0.0, %v1187
        %v1189 = vpop.f32.mrb[0].mxu0
        %1190 = vdwg.mxu0
        %v1191 = vmul.f32 %v1188, 0.5
        %v1192 = vsel %vm529, %v1191, -inf
        %1193 = vmax.xlane.f32.xlu0 %v1192
        %v1194 = vpop.xlane.xlu0 %1193
        %v1195 = vsub.f32 %v1191, %v1194
        %v1196 = vmul.f32 %v1195, 1.442695
        %v1197 = vpow.pop %v1196
        %v1198 = vsel %vm529, %v1197, 0.0
        %1199 = vadd.xlane.f32.xlu0 %v1198
        %v1200 = vpop.xlane.xlu0 %1199
        %v1201 = vrcp.pop %v1200
        %v1202 = vmul.f32 %v1197, %v1201
        %1203 = vrot.lane.b32.xlu0 %v448, 112
        %v1204 = vpop.permute.xlu0 %1203
        %v1207 = vsel %vm529, %v1202, 0
        %1209 = vmatprep.subr.mxu0 0.0
        %1210 = vmatpush1.msra.mxu0 %v1204
        %1211 = vmatprep.subr.mxu0 0.0
        %1212 = vmatpush1.msra.mxu0 0.0
        %1213 = vmatprep.subr.mxu0 0.0
        %1214 = vmatpush1.msra.mxu0 0.0
        %1215 = vmatprep.subr.mxu0 0.0
        %1216 = vmatpush1.msra.mxu0 0.0
        %1217 = vmatprep.subr.mxu0 0.0
        %1218 = vmatpush1.msra.mxu0 0.0
        %1219 = vmatprep.subr.mxu0 0.0
        %1220 = vmatpush1.msra.mxu0 0.0
        %1221 = vmatprep.subr.mxu0 0.0
        %1222 = vmatpush1.msra.mxu0 0.0
        %1223 = vmatprep.subr.mxu0 0.0
        %1224 = vmatpush1.msra.mxu0 0.0
        %1225 = vmatprep.subr.mxu0 0.0
        %1226 = vmatpush1.msra.mxu0 0.0
        %1227 = vmatprep.subr.mxu0 0.0
        %1228 = vmatpush1.msra.mxu0 0.0
        %1229 = vmatprep.subr.mxu0 0.0
        %1230 = vmatpush1.msra.mxu0 0.0
        %1231 = vmatprep.subr.mxu0 0.0
        %1232 = vmatpush1.msra.mxu0 0.0
        %1233 = vmatprep.subr.mxu0 0.0
        %1234 = vmatpush1.msra.mxu0 0.0
        %1235 = vmatprep.subr.mxu0 0.0
        %1236 = vmatpush1.msra.mxu0 0.0
        %1237 = vmatprep.subr.mxu0 0.0
        %1238 = vmatpush1.msra.mxu0 0.0
        %1239 = vmatprep.subr.mxu0 0.0
        %1240 = vmatpush1.msra.mxu0 0.0
        %1241 = vmatprep.subr.mxu0 0.0
        %1242 = vmatpush1.msra.mxu0 0.0
        %1243 = vmatprep.subr.mxu0 0.0
        %1244 = vmatpush1.msra.mxu0 0.0
        %1245 = vmatprep.subr.mxu0 0.0
        %1246 = vmatpush1.msra.mxu0 0.0
        %1247 = vmatprep.subr.mxu0 0.0
        %1248 = vmatpush1.msra.mxu0 0.0
        %1249 = vmatprep.subr.mxu0 0.0
        %1250 = vmatpush1.msra.mxu0 0.0
        %1251 = vmatprep.subr.mxu0 0.0
        %1252 = vmatpush1.msra.mxu0 0.0
        %1253 = vmatprep.subr.mxu0 0.0
        %1254 = vmatpush1.msra.mxu0 0.0
        %1255 = vmatprep.subr.mxu0 0.0
        %1256 = vmatpush1.msra.mxu0 0.0
        %1257 = vmatprep.subr.mxu0 0.0
        %1258 = vmatpush1.msra.mxu0 0.0
        %1259 = vmatprep.subr.mxu0 0.0
        %1260 = vmatpush1.msra.mxu0 0.0
        %1261 = vmatprep.subr.mxu0 0.0
        %1262 = vmatpush1.msra.mxu0 0.0
        %1263 = vmatprep.subr.mxu0 0.0
        %1264 = vmatpush1.msra.mxu0 0.0
        %1265 = vmatprep.subr.mxu0 0.0
        %1266 = vmatpush1.msra.mxu0 0.0
        %1267 = vmatprep.subr.mxu0 0.0
        %1268 = vmatpush1.msra.mxu0 0.0
        %1269 = vmatprep.subr.mxu0 0.0
        %1270 = vmatpush1.msra.mxu0 0.0
        %1271 = vmatprep.subr.mxu0 0.0
        %1272 = vmatpush1.msra.mxu0 0.0
        %1273 = vmatprep.mubr.f32.mxu0 0.0
        %1274 = vmatmul.mubr.f32.gmra.mrb[0].mxu0 %v1207
        %v1275 = vpop.f32.mrb[0].mxu0
        %v1276 = vadd.f32 0.0, %v1275
        %v1277 = vpop.f32.mrb[0].mxu0
        %1278 = vdwg.mxu0
        %1279 = vrot.lane.b32.xlu0 %v308, 108
        %v1280 = vpop.permute.xlu0 %1279
        %1281 = vrot.lane.b32.xlu0 %v378, 108
        %v1282 = vpop.permute.xlu0 %1281
        %v1283 = vsel %vm451, %v1280, 0
        %v1285 = vsel %vm451, %v1282, 0
        %1287 = vmatprep.subr.mxu0 0.0
        %1288 = vmatpush1.xpose.msra.mxu0 %v1285
        %1289 = vmatprep.subr.mxu0 0.0
        %1290 = vmatpush1.xpose.msra.mxu0 0.0
        %1291 = vmatprep.subr.mxu0 0.0
        %1292 = vmatpush1.xpose.msra.mxu0 0.0
        %1293 = vmatprep.subr.mxu0 0.0
        %1294 = vmatpush1.xpose.msra.mxu0 0.0
        %1295 = vmatprep.subr.mxu0 0.0
        %1296 = vmatpush1.xpose.msra.mxu0 0.0
        %1297 = vmatprep.subr.mxu0 0.0
        %1298 = vmatpush1.xpose.msra.mxu0 0.0
        %1299 = vmatprep.subr.mxu0 0.0
        %1300 = vmatpush1.xpose.msra.mxu0 0.0
        %1301 = vmatprep.subr.mxu0 0.0
        %1302 = vmatpush1.xpose.msra.mxu0 0.0
        %1303 = vmatprep.subr.mxu0 0.0
        %1304 = vmatpush1.xpose.msra.mxu0 0.0
        %1305 = vmatprep.subr.mxu0 0.0
        %1306 = vmatpush1.xpose.msra.mxu0 0.0
        %1307 = vmatprep.subr.mxu0 0.0
        %1308 = vmatpush1.xpose.msra.mxu0 0.0
        %1309 = vmatprep.subr.mxu0 0.0
        %1310 = vmatpush1.xpose.msra.mxu0 0.0
        %1311 = vmatprep.subr.mxu0 0.0
        %1312 = vmatpush1.xpose.msra.mxu0 0.0
        %1313 = vmatprep.subr.mxu0 0.0
        %1314 = vmatpush1.xpose.msra.mxu0 0.0
        %1315 = vmatprep.subr.mxu0 0.0
        %1316 = vmatpush1.xpose.msra.mxu0 0.0
        %1317 = vmatprep.subr.mxu0 0.0
        %1318 = vmatpush1.xpose.msra.mxu0 0.0
        %1319 = vmatprep.subr.mxu0 0.0
        %1320 = vmatpush1.xpose.msra.mxu0 0.0
        %1321 = vmatprep.subr.mxu0 0.0
        %1322 = vmatpush1.xpose.msra.mxu0 0.0
        %1323 = vmatprep.subr.mxu0 0.0
        %1324 = vmatpush1.xpose.msra.mxu0 0.0
        %1325 = vmatprep.subr.mxu0 0.0
        %1326 = vmatpush1.xpose.msra.mxu0 0.0
        %1327 = vmatprep.subr.mxu0 0.0
        %1328 = vmatpush1.xpose.msra.mxu0 0.0
        %1329 = vmatprep.subr.mxu0 0.0
        %1330 = vmatpush1.xpose.msra.mxu0 0.0
        %1331 = vmatprep.subr.mxu0 0.0
        %1332 = vmatpush1.xpose.msra.mxu0 0.0
        %1333 = vmatprep.subr.mxu0 0.0
        %1334 = vmatpush1.xpose.msra.mxu0 0.0
        %1335 = vmatprep.subr.mxu0 0.0
        %1336 = vmatpush1.xpose.msra.mxu0 0.0
        %1337 = vmatprep.subr.mxu0 0.0
        %1338 = vmatpush1.xpose.msra.mxu0 0.0
        %1339 = vmatprep.subr.mxu0 0.0
        %1340 = vmatpush1.xpose.msra.mxu0 0.0
        %1341 = vmatprep.subr.mxu0 0.0
        %1342 = vmatpush1.xpose.msra.mxu0 0.0
        %1343 = vmatprep.subr.mxu0 0.0
        %1344 = vmatpush1.xpose.msra.mxu0 0.0
        %1345 = vmatprep.subr.mxu0 0.0
        %1346 = vmatpush1.xpose.msra.mxu0 0.0
        %1347 = vmatprep.subr.mxu0 0.0
        %1348 = vmatpush1.xpose.msra.mxu0 0.0
        %1349 = vmatprep.subr.mxu0 0.0
        %1350 = vmatpush1.xpose.msra.mxu0 0.0
        %1351 = vmatprep.mubr.f32.mxu0 0.0
        %1352 = vmatmul.mubr.f32.gmra.mrb[0].mxu0 %v1283
        %v1353 = vpop.f32.mrb[0].mxu0
        %v1354 = vadd.f32 0.0, %v1353
        %v1355 = vpop.f32.mrb[0].mxu0
        %1356 = vdwg.mxu0
        %v1357 = vmul.f32 %v1354, 0.5
        %v1358 = vsel %vm529, %v1357, -inf
        %1359 = vmax.xlane.f32.xlu0 %v1358
        %v1360 = vpop.xlane.xlu0 %1359
        %v1361 = vsub.f32 %v1357, %v1360
        %v1362 = vmul.f32 %v1361, 1.442695
        %v1363 = vpow.pop %v1362
        %v1364 = vsel %vm529, %v1363, 0.0
        %1365 = vadd.xlane.f32.xlu0 %v1364
        %v1366 = vpop.xlane.xlu0 %1365
        %v1367 = vrcp.pop %v1366
        %v1368 = vmul.f32 %v1363, %v1367
        %1369 = vrot.lane.b32.xlu0 %v448, 108
        %v1370 = vpop.permute.xlu0 %1369
        %v1373 = vsel %vm529, %v1368, 0
        %1375 = vmatprep.subr.mxu0 0.0
        %1376 = vmatpush1.msra.mxu0 %v1370
        %1377 = vmatprep.subr.mxu0 0.0
        %1378 = vmatpush1.msra.mxu0 0.0
        %1379 = vmatprep.subr.mxu0 0.0
        %1380 = vmatpush1.msra.mxu0 0.0
        %1381 = vmatprep.subr.mxu0 0.0
        %1382 = vmatpush1.msra.mxu0 0.0
        %1383 = vmatprep.subr.mxu0 0.0
        %1384 = vmatpush1.msra.mxu0 0.0
        %1385 = vmatprep.subr.mxu0 0.0
        %1386 = vmatpush1.msra.mxu0 0.0
        %1387 = vmatprep.subr.mxu0 0.0
        %1388 = vmatpush1.msra.mxu0 0.0
        %1389 = vmatprep.subr.mxu0 0.0
        %1390 = vmatpush1.msra.mxu0 0.0
        %1391 = vmatprep.subr.mxu0 0.0
        %1392 = vmatpush1.msra.mxu0 0.0
        %1393 = vmatprep.subr.mxu0 0.0
        %1394 = vmatpush1.msra.mxu0 0.0
        %1395 = vmatprep.subr.mxu0 0.0
        %1396 = vmatpush1.msra.mxu0 0.0
        %1397 = vmatprep.subr.mxu0 0.0
        %1398 = vmatpush1.msra.mxu0 0.0
        %1399 = vmatprep.subr.mxu0 0.0
        %1400 = vmatpush1.msra.mxu0 0.0
        %1401 = vmatprep.subr.mxu0 0.0
        %1402 = vmatpush1.msra.mxu0 0.0
        %1403 = vmatprep.subr.mxu0 0.0
        %1404 = vmatpush1.msra.mxu0 0.0
        %1405 = vmatprep.subr.mxu0 0.0
        %1406 = vmatpush1.msra.mxu0 0.0
        %1407 = vmatprep.subr.mxu0 0.0
        %1408 = vmatpush1.msra.mxu0 0.0
        %1409 = vmatprep.subr.mxu0 0.0
        %1410 = vmatpush1.msra.mxu0 0.0
        %1411 = vmatprep.subr.mxu0 0.0
        %1412 = vmatpush1.msra.mxu0 0.0
        %1413 = vmatprep.subr.mxu0 0.0
        %1414 = vmatpush1.msra.mxu0 0.0
        %1415 = vmatprep.subr.mxu0 0.0
        %1416 = vmatpush1.msra.mxu0 0.0
        %1417 = vmatprep.subr.mxu0 0.0
        %1418 = vmatpush1.msra.mxu0 0.0
        %1419 = vmatprep.subr.mxu0 0.0
        %1420 = vmatpush1.msra.mxu0 0.0
        %1421 = vmatprep.subr.mxu0 0.0
        %1422 = vmatpush1.msra.mxu0 0.0
        %1423 = vmatprep.subr.mxu0 0.0
        %1424 = vmatpush1.msra.mxu0 0.0
        %1425 = vmatprep.subr.mxu0 0.0
        %1426 = vmatpush1.msra.mxu0 0.0
        %1427 = vmatprep.subr.mxu0 0.0
        %1428 = vmatpush1.msra.mxu0 0.0
        %1429 = vmatprep.subr.mxu0 0.0
        %1430 = vmatpush1.msra.mxu0 0.0
        %1431 = vmatprep.subr.mxu0 0.0
        %1432 = vmatpush1.msra.mxu0 0.0
        %1433 = vmatprep.subr.mxu0 0.0
        %1434 = vmatpush1.msra.mxu0 0.0
        %1435 = vmatprep.subr.mxu0 0.0
        %1436 = vmatpush1.msra.mxu0 0.0
        %1437 = vmatprep.subr.mxu0 0.0
        %1438 = vmatpush1.msra.mxu0 0.0
        %1439 = vmatprep.mubr.f32.mxu0 0.0
        %1440 = vmatmul.mubr.f32.gmra.mrb[0].mxu0 %v1373
        %v1441 = vpop.f32.mrb[0].mxu0
        %v1442 = vadd.f32 0.0, %v1441
        %v1443 = vpop.f32.mrb[0].mxu0
        %1444 = vdwg.mxu0
        %1445 = vrot.lane.b32.xlu0 %v308, 104
        %v1446 = vpop.permute.xlu0 %1445
        %1447 = vrot.lane.b32.xlu0 %v378, 104
        %v1448 = vpop.permute.xlu0 %1447
        %v1449 = vsel %vm451, %v1446, 0
        %v1451 = vsel %vm451, %v1448, 0
        %1453 = vmatprep.subr.mxu0 0.0
        %1454 = vmatpush1.xpose.msra.mxu0 %v1451
        %1455 = vmatprep.subr.mxu0 0.0
        %1456 = vmatpush1.xpose.msra.mxu0 0.0
        %1457 = vmatprep.subr.mxu0 0.0
        %1458 = vmatpush1.xpose.msra.mxu0 0.0
        %1459 = vmatprep.subr.mxu0 0.0
        %1460 = vmatpush1.xpose.msra.mxu0 0.0
        %1461 = vmatprep.subr.mxu0 0.0
        %1462 = vmatpush1.xpose.msra.mxu0 0.0
        %1463 = vmatprep.subr.mxu0 0.0
        %1464 = vmatpush1.xpose.msra.mxu0 0.0
        %1465 = vmatprep.subr.mxu0 0.0
        %1466 = vmatpush1.xpose.msra.mxu0 0.0
        %1467 = vmatprep.subr.mxu0 0.0
        %1468 = vmatpush1.xpose.msra.mxu0 0.0
        %1469 = vmatprep.subr.mxu0 0.0
        %1470 = vmatpush1.xpose.msra.mxu0 0.0
        %1471 = vmatprep.subr.mxu0 0.0
        %1472 = vmatpush1.xpose.msra.mxu0 0.0
        %1473 = vmatprep.subr.mxu0 0.0
        %1474 = vmatpush1.xpose.msra.mxu0 0.0
        %1475 = vmatprep.subr.mxu0 0.0
        %1476 = vmatpush1.xpose.msra.mxu0 0.0
        %1477 = vmatprep.subr.mxu0 0.0
        %1478 = vmatpush1.xpose.msra.mxu0 0.0
        %1479 = vmatprep.subr.mxu0 0.0
        %1480 = vmatpush1.xpose.msra.mxu0 0.0
        %1481 = vmatprep.subr.mxu0 0.0
        %1482 = vmatpush1.xpose.msra.mxu0 0.0
        %1483 = vmatprep.subr.mxu0 0.0
        %1484 = vmatpush1.xpose.msra.mxu0 0.0
        %1485 = vmatprep.subr.mxu0 0.0
        %1486 = vmatpush1.xpose.msra.mxu0 0.0
        %1487 = vmatprep.subr.mxu0 0.0
        %1488 = vmatpush1.xpose.msra.mxu0 0.0
        %1489 = vmatprep.subr.mxu0 0.0
        %1490 = vmatpush1.xpose.msra.mxu0 0.0
        %1491 = vmatprep.subr.mxu0 0.0
        %1492 = vmatpush1.xpose.msra.mxu0 0.0
        %1493 = vmatprep.subr.mxu0 0.0
        %1494 = vmatpush1.xpose.msra.mxu0 0.0
        %1495 = vmatprep.subr.mxu0 0.0
        %1496 = vmatpush1.xpose.msra.mxu0 0.0
        %1497 = vmatprep.subr.mxu0 0.0
        %1498 = vmatpush1.xpose.msra.mxu0 0.0
        %1499 = vmatprep.subr.mxu0 0.0
        %1500 = vmatpush1.xpose.msra.mxu0 0.0
        %1501 = vmatprep.subr.mxu0 0.0
        %1502 = vmatpush1.xpose.msra.mxu0 0.0
        %1503 = vmatprep.subr.mxu0 0.0
        %1504 = vmatpush1.xpose.msra.mxu0 0.0
        %1505 = vmatprep.subr.mxu0 0.0
        %1506 = vmatpush1.xpose.msra.mxu0 0.0
        %1507 = vmatprep.subr.mxu0 0.0
        %1508 = vmatpush1.xpose.msra.mxu0 0.0
        %1509 = vmatprep.subr.mxu0 0.0
        %1510 = vmatpush1.xpose.msra.mxu0 0.0
        %1511 = vmatprep.subr.mxu0 0.0
        %1512 = vmatpush1.xpose.msra.mxu0 0.0
        %1513 = vmatprep.subr.mxu0 0.0
        %1514 = vmatpush1.xpose.msra.mxu0 0.0
        %1515 = vmatprep.subr.mxu0 0.0
        %1516 = vmatpush1.xpose.msra.mxu0 0.0
        %1517 = vmatprep.mubr.f32.mxu0 0.0
        %1518 = vmatmul.mubr.f32.gmra.mrb[0].mxu0 %v1449
        %v1519 = vpop.f32.mrb[0].mxu0
        %v1520 = vadd.f32 0.0, %v1519
        %v1521 = vpop.f32.mrb[0].mxu0
        %1522 = vdwg.mxu0
        %v1523 = vmul.f32 %v1520, 0.5
        %v1524 = vsel %vm529, %v1523, -inf
        %1525 = vmax.xlane.f32.xlu0 %v1524
        %v1526 = vpop.xlane.xlu0 %1525
        %v1527 = vsub.f32 %v1523, %v1526
        %v1528 = vmul.f32 %v1527, 1.442695
        %v1529 = vpow.pop %v1528
        %v1530 = vsel %vm529, %v1529, 0.0
        %1531 = vadd.xlane.f32.xlu0 %v1530
        %v1532 = vpop.xlane.xlu0 %1531
        %v1533 = vrcp.pop %v1532
        %v1534 = vmul.f32 %v1529, %v1533
        %1535 = vrot.lane.b32.xlu0 %v448, 104
        %v1536 = vpop.permute.xlu0 %1535
        %v1539 = vsel %vm529, %v1534, 0
        %1541 = vmatprep.subr.mxu0 0.0
        %1542 = vmatpush1.msra.mxu0 %v1536
        %1543 = vmatprep.subr.mxu0 0.0
        %1544 = vmatpush1.msra.mxu0 0.0
        %1545 = vmatprep.subr.mxu0 0.0
        %1546 = vmatpush1.msra.mxu0 0.0
        %1547 = vmatprep.subr.mxu0 0.0
        %1548 = vmatpush1.msra.mxu0 0.0
        %1549 = vmatprep.subr.mxu0 0.0
        %1550 = vmatpush1.msra.mxu0 0.0
        %1551 = vmatprep.subr.mxu0 0.0
        %1552 = vmatpush1.msra.mxu0 0.0
        %1553 = vmatprep.subr.mxu0 0.0
        %1554 = vmatpush1.msra.mxu0 0.0
        %1555 = vmatprep.subr.mxu0 0.0
        %1556 = vmatpush1.msra.mxu0 0.0
        %1557 = vmatprep.subr.mxu0 0.0
        %1558 = vmatpush1.msra.mxu0 0.0
        %1559 = vmatprep.subr.mxu0 0.0
        %1560 = vmatpush1.msra.mxu0 0.0
        %1561 = vmatprep.subr.mxu0 0.0
        %1562 = vmatpush1.msra.mxu0 0.0
        %1563 = vmatprep.subr.mxu0 0.0
        %1564 = vmatpush1.msra.mxu0 0.0
        %1565 = vmatprep.subr.mxu0 0.0
        %1566 = vmatpush1.msra.mxu0 0.0
        %1567 = vmatprep.subr.mxu0 0.0
        %1568 = vmatpush1.msra.mxu0 0.0
        %1569 = vmatprep.subr.mxu0 0.0
        %1570 = vmatpush1.msra.mxu0 0.0
        %1571 = vmatprep.subr.mxu0 0.0
        %1572 = vmatpush1.msra.mxu0 0.0
        %1573 = vmatprep.subr.mxu0 0.0
        %1574 = vmatpush1.msra.mxu0 0.0
        %1575 = vmatprep.subr.mxu0 0.0
        %1576 = vmatpush1.msra.mxu0 0.0
        %1577 = vmatprep.subr.mxu0 0.0
        %1578 = vmatpush1.msra.mxu0 0.0
        %1579 = vmatprep.subr.mxu0 0.0
        %1580 = vmatpush1.msra.mxu0 0.0
        %1581 = vmatprep.subr.mxu0 0.0
        %1582 = vmatpush1.msra.mxu0 0.0
        %1583 = vmatprep.subr.mxu0 0.0
        %1584 = vmatpush1.msra.mxu0 0.0
        %1585 = vmatprep.subr.mxu0 0.0
        %1586 = vmatpush1.msra.mxu0 0.0
        %1587 = vmatprep.subr.mxu0 0.0
        %1588 = vmatpush1.msra.mxu0 0.0
        %1589 = vmatprep.subr.mxu0 0.0
        %1590 = vmatpush1.msra.mxu0 0.0
        %1591 = vmatprep.subr.mxu0 0.0
        %1592 = vmatpush1.msra.mxu0 0.0
        %1593 = vmatprep.subr.mxu0 0.0
        %1594 = vmatpush1.msra.mxu0 0.0
        %1595 = vmatprep.subr.mxu0 0.0
        %1596 = vmatpush1.msra.mxu0 0.0
        %1597 = vmatprep.subr.mxu0 0.0
        %1598 = vmatpush1.msra.mxu0 0.0
        %1599 = vmatprep.subr.mxu0 0.0
        %1600 = vmatpush1.msra.mxu0 0.0
        %1601 = vmatprep.subr.mxu0 0.0
        %1602 = vmatpush1.msra.mxu0 0.0
        %1603 = vmatprep.subr.mxu0 0.0
        %1604 = vmatpush1.msra.mxu0 0.0
        %1605 = vmatprep.mubr.f32.mxu0 0.0
        %1606 = vmatmul.mubr.f32.gmra.mrb[0].mxu0 %v1539
        %v1607 = vpop.f32.mrb[0].mxu0
        %v1608 = vadd.f32 0.0, %v1607
        %v1609 = vpop.f32.mrb[0].mxu0
        %1610 = vdwg.mxu0
        %1611 = vrot.lane.b32.xlu0 %v308, 100
        %v1612 = vpop.permute.xlu0 %1611
        %1613 = vrot.lane.b32.xlu0 %v378, 100
        %v1614 = vpop.permute.xlu0 %1613
        %v1615 = vsel %vm451, %v1612, 0
        %v1617 = vsel %vm451, %v1614, 0
        %1619 = vmatprep.subr.mxu0 0.0
        %1620 = vmatpush1.xpose.msra.mxu0 %v1617
        %1621 = vmatprep.subr.mxu0 0.0
        %1622 = vmatpush1.xpose.msra.mxu0 0.0
        %1623 = vmatprep.subr.mxu0 0.0
        %1624 = vmatpush1.xpose.msra.mxu0 0.0
        %1625 = vmatprep.subr.mxu0 0.0
        %1626 = vmatpush1.xpose.msra.mxu0 0.0
        %1627 = vmatprep.subr.mxu0 0.0
        %1628 = vmatpush1.xpose.msra.mxu0 0.0
        %1629 = vmatprep.subr.mxu0 0.0
        %1630 = vmatpush1.xpose.msra.mxu0 0.0
        %1631 = vmatprep.subr.mxu0 0.0
        %1632 = vmatpush1.xpose.msra.mxu0 0.0
        %1633 = vmatprep.subr.mxu0 0.0
        %1634 = vmatpush1.xpose.msra.mxu0 0.0
        %1635 = vmatprep.subr.mxu0 0.0
        %1636 = vmatpush1.xpose.msra.mxu0 0.0
        %1637 = vmatprep.subr.mxu0 0.0
        %1638 = vmatpush1.xpose.msra.mxu0 0.0
        %1639 = vmatprep.subr.mxu0 0.0
        %1640 = vmatpush1.xpose.msra.mxu0 0.0
        %1641 = vmatprep.subr.mxu0 0.0
        %1642 = vmatpush1.xpose.msra.mxu0 0.0
        %1643 = vmatprep.subr.mxu0 0.0
        %1644 = vmatpush1.xpose.msra.mxu0 0.0
        %1645 = vmatprep.subr.mxu0 0.0
        %1646 = vmatpush1.xpose.msra.mxu0 0.0
        %1647 = vmatprep.subr.mxu0 0.0
        %1648 = vmatpush1.xpose.msra.mxu0 0.0
        %1649 = vmatprep.subr.mxu0 0.0
        %1650 = vmatpush1.xpose.msra.mxu0 0.0
        %1651 = vmatprep.subr.mxu0 0.0
        %1652 = vmatpush1.xpose.msra.mxu0 0.0
        %1653 = vmatprep.subr.mxu0 0.0
        %1654 = vmatpush1.xpose.msra.mxu0 0.0
        %1655 = vmatprep.subr.mxu0 0.0
        %1656 = vmatpush1.xpose.msra.mxu0 0.0
        %1657 = vmatprep.subr.mxu0 0.0
        %1658 = vmatpush1.xpose.msra.mxu0 0.0
        %1659 = vmatprep.subr.mxu0 0.0
        %1660 = vmatpush1.xpose.msra.mxu0 0.0
        %1661 = vmatprep.subr.mxu0 0.0
        %1662 = vmatpush1.xpose.msra.mxu0 0.0
        %1663 = vmatprep.subr.mxu0 0.0
        %1664 = vmatpush1.xpose.msra.mxu0 0.0
        %1665 = vmatprep.subr.mxu0 0.0
        %1666 = vmatpush1.xpose.msra.mxu0 0.0
        %1667 = vmatprep.subr.mxu0 0.0
        %1668 = vmatpush1.xpose.msra.mxu0 0.0
        %1669 = vmatprep.subr.mxu0 0.0
        %1670 = vmatpush1.xpose.msra.mxu0 0.0
        %1671 = vmatprep.subr.mxu0 0.0
        %1672 = vmatpush1.xpose.msra.mxu0 0.0
        %1673 = vmatprep.subr.mxu0 0.0
        %1674 = vmatpush1.xpose.msra.mxu0 0.0
        %1675 = vmatprep.subr.mxu0 0.0
        %1676 = vmatpush1.xpose.msra.mxu0 0.0
        %1677 = vmatprep.subr.mxu0 0.0
        %1678 = vmatpush1.xpose.msra.mxu0 0.0
        %1679 = vmatprep.subr.mxu0 0.0
        %1680 = vmatpush1.xpose.msra.mxu0 0.0
        %1681 = vmatprep.subr.mxu0 0.0
        %1682 = vmatpush1.xpose.msra.mxu0 0.0
        %1683 = vmatprep.mubr.f32.mxu0 0.0
        %1684 = vmatmul.mubr.f32.gmra.mrb[0].mxu0 %v1615
        %v1685 = vpop.f32.mrb[0].mxu0
        %v1686 = vadd.f32 0.0, %v1685
        %v1687 = vpop.f32.mrb[0].mxu0
        %1688 = vdwg.mxu0
        %v1689 = vmul.f32 %v1686, 0.5
        %v1690 = vsel %vm529, %v1689, -inf
        %1691 = vmax.xlane.f32.xlu0 %v1690
        %v1692 = vpop.xlane.xlu0 %1691
        %v1693 = vsub.f32 %v1689, %v1692
        %v1694 = vmul.f32 %v1693, 1.442695
        %v1695 = vpow.pop %v1694
        %v1696 = vsel %vm529, %v1695, 0.0
        %1697 = vadd.xlane.f32.xlu0 %v1696
        %v1698 = vpop.xlane.xlu0 %1697
        %v1699 = vrcp.pop %v1698
        %v1700 = vmul.f32 %v1695, %v1699
        %1701 = vrot.lane.b32.xlu0 %v448, 100
        %v1702 = vpop.permute.xlu0 %1701
        %v1705 = vsel %vm529, %v1700, 0
        %1707 = vmatprep.subr.mxu0 0.0
        %1708 = vmatpush1.msra.mxu0 %v1702
        %1709 = vmatprep.subr.mxu0 0.0
        %1710 = vmatpush1.msra.mxu0 0.0
        %1711 = vmatprep.subr.mxu0 0.0
        %1712 = vmatpush1.msra.mxu0 0.0
        %1713 = vmatprep.subr.mxu0 0.0
        %1714 = vmatpush1.msra.mxu0 0.0
        %1715 = vmatprep.subr.mxu0 0.0
        %1716 = vmatpush1.msra.mxu0 0.0
        %1717 = vmatprep.subr.mxu0 0.0
        %1718 = vmatpush1.msra.mxu0 0.0
        %1719 = vmatprep.subr.mxu0 0.0
        %1720 = vmatpush1.msra.mxu0 0.0
        %1721 = vmatprep.subr.mxu0 0.0
        %1722 = vmatpush1.msra.mxu0 0.0
        %1723 = vmatprep.subr.mxu0 0.0
        %1724 = vmatpush1.msra.mxu0 0.0
        %1725 = vmatprep.subr.mxu0 0.0
        %1726 = vmatpush1.msra.mxu0 0.0
        %1727 = vmatprep.subr.mxu0 0.0
        %1728 = vmatpush1.msra.mxu0 0.0
        %1729 = vmatprep.subr.mxu0 0.0
        %1730 = vmatpush1.msra.mxu0 0.0
        %1731 = vmatprep.subr.mxu0 0.0
        %1732 = vmatpush1.msra.mxu0 0.0
        %1733 = vmatprep.subr.mxu0 0.0
        %1734 = vmatpush1.msra.mxu0 0.0
        %1735 = vmatprep.subr.mxu0 0.0
        %1736 = vmatpush1.msra.mxu0 0.0
        %1737 = vmatprep.subr.mxu0 0.0
        %1738 = vmatpush1.msra.mxu0 0.0
        %1739 = vmatprep.subr.mxu0 0.0
        %1740 = vmatpush1.msra.mxu0 0.0
        %1741 = vmatprep.subr.mxu0 0.0
        %1742 = vmatpush1.msra.mxu0 0.0
        %1743 = vmatprep.subr.mxu0 0.0
        %1744 = vmatpush1.msra.mxu0 0.0
        %1745 = vmatprep.subr.mxu0 0.0
        %1746 = vmatpush1.msra.mxu0 0.0
        %1747 = vmatprep.subr.mxu0 0.0
        %1748 = vmatpush1.msra.mxu0 0.0
        %1749 = vmatprep.subr.mxu0 0.0
        %1750 = vmatpush1.msra.mxu0 0.0
        %1751 = vmatprep.subr.mxu0 0.0
        %1752 = vmatpush1.msra.mxu0 0.0
        %1753 = vmatprep.subr.mxu0 0.0
        %1754 = vmatpush1.msra.mxu0 0.0
        %1755 = vmatprep.subr.mxu0 0.0
        %1756 = vmatpush1.msra.mxu0 0.0
        %1757 = vmatprep.subr.mxu0 0.0
        %1758 = vmatpush1.msra.mxu0 0.0
        %1759 = vmatprep.subr.mxu0 0.0
        %1760 = vmatpush1.msra.mxu0 0.0
        %1761 = vmatprep.subr.mxu0 0.0
        %1762 = vmatpush1.msra.mxu0 0.0
        %1763 = vmatprep.subr.mxu0 0.0
        %1764 = vmatpush1.msra.mxu0 0.0
        %1765 = vmatprep.subr.mxu0 0.0
        %1766 = vmatpush1.msra.mxu0 0.0
        %1767 = vmatprep.subr.mxu0 0.0
        %1768 = vmatpush1.msra.mxu0 0.0
        %1769 = vmatprep.subr.mxu0 0.0
        %1770 = vmatpush1.msra.mxu0 0.0
        %1771 = vmatprep.mubr.f32.mxu0 0.0
        %1772 = vmatmul.mubr.f32.gmra.mrb[0].mxu0 %v1705
        %v1773 = vpop.f32.mrb[0].mxu0
        %v1774 = vadd.f32 0.0, %v1773
        %v1775 = vpop.f32.mrb[0].mxu0
        %1776 = vdwg.mxu0
        %1778 = vrot.lane.b32.xlu0 %v778, 4
        %v1779 = vpop.permute.xlu0 %1778
        %1782 = vrot.lane.b32.xlu0 %v944, 8
        %v1783 = vpop.permute.xlu0 %1782
        %1786 = vrot.lane.b32.xlu0 %v1110, 12
        %v1787 = vpop.permute.xlu0 %1786
        %1790 = vrot.lane.b32.xlu0 %v1276, 16
        %v1791 = vpop.permute.xlu0 %1790
        %1794 = vrot.lane.b32.xlu0 %v1442, 20
        %v1795 = vpop.permute.xlu0 %1794
        %1798 = vrot.lane.b32.xlu0 %v1608, 24
        %v1799 = vpop.permute.xlu0 %1798
        %1802 = vrot.lane.b32.xlu0 %v1774, 28
        %v1803 = vpop.permute.xlu0 %1802
        %v1805 = vsel %vm451, %v611, %v1779
        %v1806 = vsel %vm529, %v1805, %v1783
        %vm1807 = vcmask 97280
        %v1808 = vsel %vm1807, %v1806, %v1787
        %vm1809 = vcmask 130048
        %v1810 = vsel %vm1809, %v1808, %v1791
        %vm1811 = vcmask 162816
        %v1812 = vsel %vm1811, %v1810, %v1795
        %vm1813 = vcmask 195584
        %v1814 = vsel %vm1813, %v1812, %v1799
        %vm1815 = vcmask 228352
        %v1816 = vsel %vm1815, %v1814, %v1803
        %v1818 = vsel %vm237, %v1816, 0
        %1820 = vmatprep.subr.mxu0 0.0
        %1821 = vmatpush1.msra.mxu0 %v233
        %1822 = vmatprep.subr.mxu0 0.0
        %1823 = vmatpush1.msra.mxu0 %v234
        %1824 = vmatprep.subr.mxu0 0.0
        %1825 = vmatpush1.msra.mxu0 %v235
        %1826 = vmatprep.subr.mxu0 0.0
        %1827 = vmatpush1.msra.mxu0 %v236
        %1828 = vmatprep.subr.mxu0 0.0
        %1829 = vmatpush1.msra.mxu0 0.0
        %1830 = vmatprep.subr.mxu0 0.0
        %1831 = vmatpush1.msra.mxu0 0.0
        %1832 = vmatprep.subr.mxu0 0.0
        %1833 = vmatpush1.msra.mxu0 0.0
        %1834 = vmatprep.subr.mxu0 0.0
        %1835 = vmatpush1.msra.mxu0 0.0
        %1836 = vmatprep.subr.mxu0 0.0
        %1837 = vmatpush1.msra.mxu0 0.0
        %1838 = vmatprep.subr.mxu0 0.0
        %1839 = vmatpush1.msra.mxu0 0.0
        %1840 = vmatprep.subr.mxu0 0.0
        %1841 = vmatpush1.msra.mxu0 0.0
        %1842 = vmatprep.subr.mxu0 0.0
        %1843 = vmatpush1.msra.mxu0 0.0
        %1844 = vmatprep.subr.mxu0 0.0
        %1845 = vmatpush1.msra.mxu0 0.0
        %1846 = vmatprep.subr.mxu0 0.0
        %1847 = vmatpush1.msra.mxu0 0.0
        %1848 = vmatprep.subr.mxu0 0.0
        %1849 = vmatpush1.msra.mxu0 0.0
        %1850 = vmatprep.subr.mxu0 0.0
        %1851 = vmatpush1.msra.mxu0 0.0
        %1852 = vmatprep.subr.mxu0 0.0
        %1853 = vmatpush1.msra.mxu0 0.0
        %1854 = vmatprep.subr.mxu0 0.0
        %1855 = vmatpush1.msra.mxu0 0.0
        %1856 = vmatprep.subr.mxu0 0.0
        %1857 = vmatpush1.msra.mxu0 0.0
        %1858 = vmatprep.subr.mxu0 0.0
        %1859 = vmatpush1.msra.mxu0 0.0
        %1860 = vmatprep.subr.mxu0 0.0
        %1861 = vmatpush1.msra.mxu0 0.0
        %1862 = vmatprep.subr.mxu0 0.0
        %1863 = vmatpush1.msra.mxu0 0.0
        %1864 = vmatprep.subr.mxu0 0.0
        %1865 = vmatpush1.msra.mxu0 0.0
        %1866 = vmatprep.subr.mxu0 0.0
        %1867 = vmatpush1.msra.mxu0 0.0
        %1868 = vmatprep.subr.mxu0 0.0
        %1869 = vmatpush1.msra.mxu0 0.0
        %1870 = vmatprep.subr.mxu0 0.0
        %1871 = vmatpush1.msra.mxu0 0.0
        %1872 = vmatprep.subr.mxu0 0.0
        %1873 = vmatpush1.msra.mxu0 0.0
        %1874 = vmatprep.subr.mxu0 0.0
        %1875 = vmatpush1.msra.mxu0 0.0
        %1876 = vmatprep.subr.mxu0 0.0
        %1877 = vmatpush1.msra.mxu0 0.0
        %1878 = vmatprep.subr.mxu0 0.0
        %1879 = vmatpush1.msra.mxu0 0.0
        %1880 = vmatprep.subr.mxu0 0.0
        %1881 = vmatpush1.msra.mxu0 0.0
        %1882 = vmatprep.subr.mxu0 0.0
        %1883 = vmatpush1.msra.mxu0 0.0
        %1884 = vmatprep.mubr.f32.mxu0 0.0
        %1885 = vmatmul.mubr.f32.gmra.mrb[0].mxu0 %v1818
        %v1886 = vpop.f32.mrb[0].mxu0
        %v1887 = vadd.f32 0.0, %v1886
        %v1888 = vpop.f32.mrb[0].mxu0
        %1889 = vdwg.mxu0
        %1890 = vst.msk [vmem:[%s215] sm:$0xff] %vm237, %v1887
        %s1891 = sand.u32 %s137, 1
        %s1892 = scalar_lea.sflag [#allocation3], %s1891
        %s1893 = sand.u32 %s137, 1
        %s1894 = smul.addr %s1893, 8
        %s1895 = scalar_lea.vmem [#allocation2], %s1894
        // Predicated region
        $region41: #{mha_forward.1} parent=39 // pred_check
          %p1896 = pneg %p147
        $region42: #{mha_forward.1} parent=39 // pred_check_branch
          %1898 = sbr.rel (%p1896) target = $region44
        $region43: #{mha_forward.1} parent=39 // pred_region
          %s1900 = ssub.s32 128, 128
          %1901 = vsyncadd %s1892, %s1900
          %s1902 = smul.addr %s19, 128
          %s1903 = scalar_lea.hbm %s5, %s1902
          %s1905 = sshll.u32 %s1895, 4
          %s1906 = int_to_ptr.vmem [resolvable:$true] %s1905
          %1908 = dma.vmem_to_hbm [thread:$0]  %s1906, 128, %s1903, %s1892
        $region44: #{mha_forward.1} parent=39 // pred_fallthru
          _
      $region40: #{mha_forward.1} parent=5 // pred_fallthru
        _
      %p1909 = scmp.le.s32.totalorder 2, %s14
      // Predicated region
      $region45: #{mha_forward.1} parent=5 // pred_check
        %p1910 = pneg %p1909
      $region46: #{mha_forward.1} parent=5 // pred_check_branch
        %1912 = sbr.rel (%p1910) target = $region48
      $region47: #{mha_forward.1} parent=5 // pred_region
        %s1913 = ssub.s32 %s14, 2
        // Predicated region
        $region49: #{mha_forward.1} parent=47 // pred_check
          %p1914 = pneg %p153
        $region50: #{mha_forward.1} parent=47 // pred_check_branch
          %1916 = sbr.rel (%p1914) target = $region52
        $region51: #{mha_forward.1} parent=47 // pred_region
          %s1917 = sand.u32 %s138, 1
          %s1918 = scalar_lea.sflag [#allocation3], %s1917
          %s1919 = sand.u32 %s138, 1
          %s1920 = smul.addr %s1919, 8
          %s1921 = scalar_lea.vmem [#allocation2], %s1920
          %1922 = dma.done %s1918, 128
        $region52: #{mha_forward.1} parent=47 // pred_fallthru
          _
      $region48: #{mha_forward.1} parent=5 // pred_fallthru
        _
    $region6: #{mha_forward.1} parent=1 // loop_footer
      %s18 = sadd.s32 1, %s14
    $region7: #{mha_forward.1} parent=1 // loop_footer_branch
      %13 = sbr.rel target = $region3
    $region8: #{mha_forward.1} parent=1 // loop_exit
      _
    %1923 = vsyncpa [#allocation3], 1
    %s1924 = scalar_lea.sflag [#allocation3], 1
    %1925 = vsyncpa %s1924, 1

</llo_original>
